<compile_context>
chip_gen: v7x
topology: tpu7x:2x2x1
jax: 0.10.0
libtpu: 0.0.40
codegen_flags: <defaults>
</compile_context>

<pallas_src>
import functools

import jax
import jax.numpy as jnp
import numpy as np
from jax.experimental import pallas as pl
from jax.experimental.pallas import tpu as pltpu

C_IN = 3
C_OUT = 3
K = 3  # 3x3 kernel, stride 1, padding 1

# Tap offsets (dy, dx), ordered to match the flattened (ky, kx) of the weight.
_TAPS = tuple((dy, dx) for dy in (-1, 0, 1) for dx in (-1, 0, 1))


def conv3x3_kernel(x_ref, w_ref, b_ref, cmask_ref, o_ref, xpad_ref, *, W):
    """Whole conv in one invocation, flat lane-dense layout.

    x_ref:     (B*C_IN, H*W)          VMEM  flattened frame-0 images
    w_ref:     (C_OUT*C_IN*9,)        SMEM  flat f32 conv weights
    b_ref:     (C_OUT,)               SMEM  f32 bias
    cmask_ref: (2, H*W)               VMEM  column masks for dx=-1 / dx=+1
    o_ref:     (B*C_OUT, H*W)         VMEM  flattened outputs (lane dense)
    xpad_ref:  (B*C_IN, H*W + 2*(W+1)) VMEM scratch, in-kernel zero padding
    """
    HW = x_ref.shape[1]
    B = x_ref.shape[0] // C_IN
    P = W + 1  # flat left/right zero-pad width (covers dy = +/-1, dx = +/-1)

    # --- in-kernel zero padding: memset edge strips, copy frame interior ---
    zeros_strip = jnp.zeros((B * C_IN, P), dtype=jnp.float32)
    xpad_ref[:, :P] = zeros_strip
    xpad_ref[:, P + HW:] = zeros_strip
    xpad_ref[:, P:P + HW] = x_ref[...].astype(jnp.float32)

    # Column-validity masks for horizontal taps; vertical out-of-range taps
    # are already handled by the flat zero padding itself.
    col_mask = {-1: cmask_ref[0:1, :], 1: cmask_ref[1:2, :]}

    for b in range(B):
        # f32 accumulators, one per output channel, initialized with bias.
        accs = [jnp.full((1, HW), b_ref[co], dtype=jnp.float32)
                for co in range(C_OUT)]
        for ci in range(C_IN):
            # Load this padded input-channel row once; the 9 taps below are
            # static lane-shifted slices of it (XLU shifts, no extra loads).
            row = xpad_ref[b * C_IN + ci:b * C_IN + ci + 1, :]  # (1, HW+2P)
            for t, (dy, dx) in enumerate(_TAPS):
                start = P + dy * W + dx
                tap = row[:, start:start + HW]          # (1, HW)
                if dx != 0:
                    tap = tap * col_mask[dx]            # kill row-wrap lanes
                for co in range(C_OUT):
                    wv = w_ref[(co * C_IN + ci) * (K * K) + t]  # SMEM scalar
                    accs[co] = accs[co] + wv * tap
        # Store each output channel directly (no stack / relayout).
        for co in range(C_OUT):
            r = b * C_OUT + co
            o_ref[r:r + 1, :] = accs[co].astype(o_ref.dtype)


def _col_masks(H, W):
    """(2, H*W) f32: row 0 -> dx=-1 stays in-row, row 1 -> dx=+1 stays in-row."""
    j = np.tile(np.arange(W), H)                 # column index of each lane
    left = (j >= 1).astype(np.float32)           # x[i, j-1] valid
    right = (j <= W - 2).astype(np.float32)      # x[i, j+1] valid
    return jnp.asarray(np.stack([left, right]))


def interpolate_example2_forward(x, weight, bias):
    """x: [B, T, 3, H, W] -> [B, 1, 3, H, W] (conv applied to frame 0)."""
    B, T, C, H, W = x.shape
    assert C == C_IN

    frame0 = x[:, 0]                                   # [B, 3, H, W]
    x_flat = frame0.reshape(B * C_IN, H * W)           # lane-dense rows
    w_flat = weight.reshape(-1).astype(jnp.float32)    # (C_OUT*C_IN*9,)
    b_flat = bias.reshape(-1).astype(jnp.float32)      # (C_OUT,)
    cmask = _col_masks(H, W)                           # (2, H*W)

    out_flat = pl.pallas_call(
        functools.partial(conv3x3_kernel, W=W),
        out_shape=jax.ShapeDtypeStruct((B * C_OUT, H * W), x.dtype),
        in_specs=[
            pl.BlockSpec(memory_space=pltpu.MemorySpace.VMEM),   # x_flat
            pl.BlockSpec(memory_space=pltpu.MemorySpace.SMEM),   # weights
            pl.BlockSpec(memory_space=pltpu.MemorySpace.SMEM),   # bias
            pl.BlockSpec(memory_space=pltpu.MemorySpace.VMEM),   # col masks
        ],
        out_specs=pl.BlockSpec(memory_space=pltpu.MemorySpace.VMEM),
        scratch_shapes=[
            pltpu.VMEM((B * C_IN, H * W + 2 * (W + 1)), jnp.float32),
        ],
    )(x_flat, w_flat, b_flat, cmask)

    out = out_flat.reshape(B, C_OUT, H, W)
    return out[:, None]  # unsqueeze(1) -> [B, 1, 3, H, W]


def reference_forward(x, weight, bias):
    """Pure-JAX reference (lax conv) for correctness check."""
    frame0 = x[:, 0]
    out = jax.lax.conv_general_dilated(
        frame0, weight, window_strides=(1, 1), padding=((1, 1), (1, 1)),
        dimension_numbers=("NCHW", "OIHW", "NCHW"))
    out = out + bias.reshape(1, C_OUT, 1, 1)
    return out[:, None]


if __name__ == "__main__":
    key = jax.random.PRNGKey(0)
    kx, kw, kb = jax.random.split(key, 3)

    B, T, H, W = 2, 2, 16, 16
    x = jax.random.normal(kx, (B, T, C_IN, H, W), dtype=jnp.float32)

    # Deterministic synthetic conv parameters (Conv2d(3, 3, 3, 1, 1) shapes).
    weight = jax.random.normal(kw, (C_OUT, C_IN, K, K), dtype=jnp.float32) * 0.1
    bias = jax.random.normal(kb, (C_OUT,), dtype=jnp.float32) * 0.1

    out = interpolate_example2_forward(x, weight, bias)
    out = jax.block_until_ready(out)

    ref = reference_forward(x, weight, bias)
    assert out.shape == (B, 1, C_OUT, H, W), out.shape
    assert jnp.allclose(out, ref, atol=1e-5, rtol=1e-5), "mismatch vs reference"

    print("KERNEL_OK")
</pallas_src>

<mosaic_0001>
module attributes {stable_mosaic.version = 11 : i64} {
  func.func @conv3x3_kernel(%arg0: memref<6x256xf32, #tpu.memory_space<vmem>>, %arg1: memref<81xf32, #tpu.memory_space<smem>>, %arg2: memref<3xf32, #tpu.memory_space<smem>>, %arg3: memref<2x256xf32, #tpu.memory_space<vmem>>, %arg4: memref<6x256xf32, #tpu.memory_space<vmem>>, %arg5: memref<6x290xf32, #tpu.memory_space<vmem>>) attributes {dimension_semantics = [], scalar_prefetch = 0 : i64, scratch_operands = 1 : i64, tpu.core_type = #tpu.core_type<tc>} {
    %cst = arith.constant 0.000000e+00 : f32
    %0 = vector.broadcast %cst : f32 to vector<6x17xf32>
    %c0 = arith.constant 0 : index
    %c0_0 = arith.constant 0 : index
    %1 = vector.load %arg5[%c0, %c0_0] : memref<6x290xf32, #tpu.memory_space<vmem>>, vector<6x17xf32>
    tpu.vector_store %arg5[%c0, %c0_0], %0 {strides = array<i32>} : memref<6x290xf32, #tpu.memory_space<vmem>>, vector<6x17xf32>,
    %c0_1 = arith.constant 0 : index
    %c273 = arith.constant 273 : index
    %2 = vector.load %arg5[%c0_1, %c273] : memref<6x290xf32, #tpu.memory_space<vmem>>, vector<6x17xf32>
    tpu.vector_store %arg5[%c0_1, %c273], %0 {strides = array<i32>} : memref<6x290xf32, #tpu.memory_space<vmem>>, vector<6x17xf32>,
    %c0_2 = arith.constant 0 : index
    %c0_3 = arith.constant 0 : index
    %3 = vector.load %arg0[%c0_2, %c0_3] : memref<6x256xf32, #tpu.memory_space<vmem>>, vector<6x256xf32>
    %c0_4 = arith.constant 0 : index
    %c17 = arith.constant 17 : index
    %4 = vector.load %arg5[%c0_4, %c17] : memref<6x290xf32, #tpu.memory_space<vmem>>, vector<6x256xf32>
    tpu.vector_store %arg5[%c0_4, %c17], %3 {strides = array<i32>} : memref<6x290xf32, #tpu.memory_space<vmem>>, vector<6x256xf32>,
    %c0_5 = arith.constant 0 : index
    %c0_6 = arith.constant 0 : index
    %5 = vector.load %arg3[%c0_5, %c0_6] : memref<2x256xf32, #tpu.memory_space<vmem>>, vector<1x256xf32>
    %c1 = arith.constant 1 : index
    %c0_7 = arith.constant 0 : index
    %6 = vector.load %arg3[%c1, %c0_7] : memref<2x256xf32, #tpu.memory_space<vmem>>, vector<1x256xf32>
    %c0_8 = arith.constant 0 : index
    %7 = memref.load %arg2[%c0_8] : memref<3xf32, #tpu.memory_space<smem>>
    %8 = vector.broadcast %7 : f32 to vector<1x256xf32>
    %c1_9 = arith.constant 1 : index
    %9 = memref.load %arg2[%c1_9] : memref<3xf32, #tpu.memory_space<smem>>
    %10 = vector.broadcast %9 : f32 to vector<1x256xf32>
    %c2 = arith.constant 2 : index
    %11 = memref.load %arg2[%c2] : memref<3xf32, #tpu.memory_space<smem>>
    %12 = vector.broadcast %11 : f32 to vector<1x256xf32>
    %c0_10 = arith.constant 0 : index
    %c0_11 = arith.constant 0 : index
    %13 = vector.load %arg5[%c0_10, %c0_11] : memref<6x290xf32, #tpu.memory_space<vmem>>, vector<1x290xf32>
    %14 = vector.extract_strided_slice %13 {offsets = [0, 0], sizes = [1, 256], strides = [1, 1]} : vector<1x290xf32> to vector<1x256xf32>
    %15 = arith.mulf %14, %5 : vector<1x256xf32>
    %c0_12 = arith.constant 0 : index
    %16 = memref.load %arg1[%c0_12] : memref<81xf32, #tpu.memory_space<smem>>
    %17 = vector.broadcast %16 : f32 to vector<1x256xf32>
    %18 = arith.mulf %17, %15 : vector<1x256xf32>
    %19 = arith.addf %8, %18 : vector<1x256xf32>
    %c27 = arith.constant 27 : index
    %20 = memref.load %arg1[%c27] : memref<81xf32, #tpu.memory_space<smem>>
    %21 = vector.broadcast %20 : f32 to vector<1x256xf32>
    %22 = arith.mulf %21, %15 : vector<1x256xf32>
    %23 = arith.addf %10, %22 : vector<1x256xf32>
    %c54 = arith.constant 54 : index
    %24 = memref.load %arg1[%c54] : memref<81xf32, #tpu.memory_space<smem>>
    %25 = vector.broadcast %24 : f32 to vector<1x256xf32>
    %26 = arith.mulf %25, %15 : vector<1x256xf32>
    %27 = arith.addf %12, %26 : vector<1x256xf32>
    %28 = vector.extract_strided_slice %13 {offsets = [0, 1], sizes = [1, 256], strides = [1, 1]} : vector<1x290xf32> to vector<1x256xf32>
    %c1_13 = arith.constant 1 : index
    %29 = memref.load %arg1[%c1_13] : memref<81xf32, #tpu.memory_space<smem>>
    %30 = vector.broadcast %29 : f32 to vector<1x256xf32>
    %31 = arith.mulf %30, %28 : vector<1x256xf32>
    %32 = arith.addf %19, %31 : vector<1x256xf32>
    %c28 = arith.constant 28 : index
    %33 = memref.load %arg1[%c28] : memref<81xf32, #tpu.memory_space<smem>>
    %34 = vector.broadcast %33 : f32 to vector<1x256xf32>
    %35 = arith.mulf %34, %28 : vector<1x256xf32>
    %36 = arith.addf %23, %35 : vector<1x256xf32>
    %c55 = arith.constant 55 : index
    %37 = memref.load %arg1[%c55] : memref<81xf32, #tpu.memory_space<smem>>
    %38 = vector.broadcast %37 : f32 to vector<1x256xf32>
    %39 = arith.mulf %38, %28 : vector<1x256xf32>
    %40 = arith.addf %27, %39 : vector<1x256xf32>
    %41 = vector.extract_strided_slice %13 {offsets = [0, 2], sizes = [1, 256], strides = [1, 1]} : vector<1x290xf32> to vector<1x256xf32>
    %42 = arith.mulf %41, %6 : vector<1x256xf32>
    %c2_14 = arith.constant 2 : index
    %43 = memref.load %arg1[%c2_14] : memref<81xf32, #tpu.memory_space<smem>>
    %44 = vector.broadcast %43 : f32 to vector<1x256xf32>
    %45 = arith.mulf %44, %42 : vector<1x256xf32>
    %46 = arith.addf %32, %45 : vector<1x256xf32>
    %c29 = arith.constant 29 : index
    %47 = memref.load %arg1[%c29] : memref<81xf32, #tpu.memory_space<smem>>
    %48 = vector.broadcast %47 : f32 to vector<1x256xf32>
    %49 = arith.mulf %48, %42 : vector<1x256xf32>
    %50 = arith.addf %36, %49 : vector<1x256xf32>
    %c56 = arith.constant 56 : index
    %51 = memref.load %arg1[%c56] : memref<81xf32, #tpu.memory_space<smem>>
    %52 = vector.broadcast %51 : f32 to vector<1x256xf32>
    %53 = arith.mulf %52, %42 : vector<1x256xf32>
    %54 = arith.addf %40, %53 : vector<1x256xf32>
    %55 = vector.extract_strided_slice %13 {offsets = [0, 16], sizes = [1, 256], strides = [1, 1]} : vector<1x290xf32> to vector<1x256xf32>
    %56 = arith.mulf %55, %5 : vector<1x256xf32>
    %c3 = arith.constant 3 : index
    %57 = memref.load %arg1[%c3] : memref<81xf32, #tpu.memory_space<smem>>
    %58 = vector.broadcast %57 : f32 to vector<1x256xf32>
    %59 = arith.mulf %58, %56 : vector<1x256xf32>
    %60 = arith.addf %46, %59 : vector<1x256xf32>
    %c30 = arith.constant 30 : index
    %61 = memref.load %arg1[%c30] : memref<81xf32, #tpu.memory_space<smem>>
    %62 = vector.broadcast %61 : f32 to vector<1x256xf32>
    %63 = arith.mulf %62, %56 : vector<1x256xf32>
    %64 = arith.addf %50, %63 : vector<1x256xf32>
    %c57 = arith.constant 57 : index
    %65 = memref.load %arg1[%c57] : memref<81xf32, #tpu.memory_space<smem>>
    %66 = vector.broadcast %65 : f32 to vector<1x256xf32>
    %67 = arith.mulf %66, %56 : vector<1x256xf32>
    %68 = arith.addf %54, %67 : vector<1x256xf32>
    %69 = vector.extract_strided_slice %13 {offsets = [0, 17], sizes = [1, 256], strides = [1, 1]} : vector<1x290xf32> to vector<1x256xf32>
    %c4 = arith.constant 4 : index
    %70 = memref.load %arg1[%c4] : memref<81xf32, #tpu.memory_space<smem>>
    %71 = vector.broadcast %70 : f32 to vector<1x256xf32>
    %72 = arith.mulf %71, %69 : vector<1x256xf32>
    %73 = arith.addf %60, %72 : vector<1x256xf32>
    %c31 = arith.constant 31 : index
    %74 = memref.load %arg1[%c31] : memref<81xf32, #tpu.memory_space<smem>>
    %75 = vector.broadcast %74 : f32 to vector<1x256xf32>
    %76 = arith.mulf %75, %69 : vector<1x256xf32>
    %77 = arith.addf %64, %76 : vector<1x256xf32>
    %c58 = arith.constant 58 : index
    %78 = memref.load %arg1[%c58] : memref<81xf32, #tpu.memory_space<smem>>
    %79 = vector.broadcast %78 : f32 to vector<1x256xf32>
    %80 = arith.mulf %79, %69 : vector<1x256xf32>
    %81 = arith.addf %68, %80 : vector<1x256xf32>
    %82 = vector.extract_strided_slice %13 {offsets = [0, 18], sizes = [1, 256], strides = [1, 1]} : vector<1x290xf32> to vector<1x256xf32>
    %83 = arith.mulf %82, %6 : vector<1x256xf32>
    %c5 = arith.constant 5 : index
    %84 = memref.load %arg1[%c5] : memref<81xf32, #tpu.memory_space<smem>>
    %85 = vector.broadcast %84 : f32 to vector<1x256xf32>
    %86 = arith.mulf %85, %83 : vector<1x256xf32>
    %87 = arith.addf %73, %86 : vector<1x256xf32>
    %c32 = arith.constant 32 : index
    %88 = memref.load %arg1[%c32] : memref<81xf32, #tpu.memory_space<smem>>
    %89 = vector.broadcast %88 : f32 to vector<1x256xf32>
    %90 = arith.mulf %89, %83 : vector<1x256xf32>
    %91 = arith.addf %77, %90 : vector<1x256xf32>
    %c59 = arith.constant 59 : index
    %92 = memref.load %arg1[%c59] : memref<81xf32, #tpu.memory_space<smem>>
    %93 = vector.broadcast %92 : f32 to vector<1x256xf32>
    %94 = arith.mulf %93, %83 : vector<1x256xf32>
    %95 = arith.addf %81, %94 : vector<1x256xf32>
    %96 = vector.extract_strided_slice %13 {offsets = [0, 32], sizes = [1, 256], strides = [1, 1]} : vector<1x290xf32> to vector<1x256xf32>
    %97 = arith.mulf %96, %5 : vector<1x256xf32>
    %c6 = arith.constant 6 : index
    %98 = memref.load %arg1[%c6] : memref<81xf32, #tpu.memory_space<smem>>
    %99 = vector.broadcast %98 : f32 to vector<1x256xf32>
    %100 = arith.mulf %99, %97 : vector<1x256xf32>
    %101 = arith.addf %87, %100 : vector<1x256xf32>
    %c33 = arith.constant 33 : index
    %102 = memref.load %arg1[%c33] : memref<81xf32, #tpu.memory_space<smem>>
    %103 = vector.broadcast %102 : f32 to vector<1x256xf32>
    %104 = arith.mulf %103, %97 : vector<1x256xf32>
    %105 = arith.addf %91, %104 : vector<1x256xf32>
    %c60 = arith.constant 60 : index
    %106 = memref.load %arg1[%c60] : memref<81xf32, #tpu.memory_space<smem>>
    %107 = vector.broadcast %106 : f32 to vector<1x256xf32>
    %108 = arith.mulf %107, %97 : vector<1x256xf32>
    %109 = arith.addf %95, %108 : vector<1x256xf32>
    %110 = vector.extract_strided_slice %13 {offsets = [0, 33], sizes = [1, 256], strides = [1, 1]} : vector<1x290xf32> to vector<1x256xf32>
    %c7 = arith.constant 7 : index
    %111 = memref.load %arg1[%c7] : memref<81xf32, #tpu.memory_space<smem>>
    %112 = vector.broadcast %111 : f32 to vector<1x256xf32>
    %113 = arith.mulf %112, %110 : vector<1x256xf32>
    %114 = arith.addf %101, %113 : vector<1x256xf32>
    %c34 = arith.constant 34 : index
    %115 = memref.load %arg1[%c34] : memref<81xf32, #tpu.memory_space<smem>>
    %116 = vector.broadcast %115 : f32 to vector<1x256xf32>
    %117 = arith.mulf %116, %110 : vector<1x256xf32>
    %118 = arith.addf %105, %117 : vector<1x256xf32>
    %c61 = arith.constant 61 : index
    %119 = memref.load %arg1[%c61] : memref<81xf32, #tpu.memory_space<smem>>
    %120 = vector.broadcast %119 : f32 to vector<1x256xf32>
    %121 = arith.mulf %120, %110 : vector<1x256xf32>
    %122 = arith.addf %109, %121 : vector<1x256xf32>
    %123 = vector.extract_strided_slice %13 {offsets = [0, 34], sizes = [1, 256], strides = [1, 1]} : vector<1x290xf32> to vector<1x256xf32>
    %124 = arith.mulf %123, %6 : vector<1x256xf32>
    %c8 = arith.constant 8 : index
    %125 = memref.load %arg1[%c8] : memref<81xf32, #tpu.memory_space<smem>>
    %126 = vector.broadcast %125 : f32 to vector<1x256xf32>
    %127 = arith.mulf %126, %124 : vector<1x256xf32>
    %128 = arith.addf %114, %127 : vector<1x256xf32>
    %c35 = arith.constant 35 : index
    %129 = memref.load %arg1[%c35] : memref<81xf32, #tpu.memory_space<smem>>
    %130 = vector.broadcast %129 : f32 to vector<1x256xf32>
    %131 = arith.mulf %130, %124 : vector<1x256xf32>
    %132 = arith.addf %118, %131 : vector<1x256xf32>
    %c62 = arith.constant 62 : index
    %133 = memref.load %arg1[%c62] : memref<81xf32, #tpu.memory_space<smem>>
    %134 = vector.broadcast %133 : f32 to vector<1x256xf32>
    %135 = arith.mulf %134, %124 : vector<1x256xf32>
    %136 = arith.addf %122, %135 : vector<1x256xf32>
    %c1_15 = arith.constant 1 : index
    %c0_16 = arith.constant 0 : index
    %137 = vector.load %arg5[%c1_15, %c0_16] : memref<6x290xf32, #tpu.memory_space<vmem>>, vector<1x290xf32>
    %138 = vector.extract_strided_slice %137 {offsets = [0, 0], sizes = [1, 256], strides = [1, 1]} : vector<1x290xf32> to vector<1x256xf32>
    %139 = arith.mulf %138, %5 : vector<1x256xf32>
    %c9 = arith.constant 9 : index
    %140 = memref.load %arg1[%c9] : memref<81xf32, #tpu.memory_space<smem>>
    %141 = vector.broadcast %140 : f32 to vector<1x256xf32>
    %142 = arith.mulf %141, %139 : vector<1x256xf32>
    %143 = arith.addf %128, %142 : vector<1x256xf32>
    %c36 = arith.constant 36 : index
    %144 = memref.load %arg1[%c36] : memref<81xf32, #tpu.memory_space<smem>>
    %145 = vector.broadcast %144 : f32 to vector<1x256xf32>
    %146 = arith.mulf %145, %139 : vector<1x256xf32>
    %147 = arith.addf %132, %146 : vector<1x256xf32>
    %c63 = arith.constant 63 : index
    %148 = memref.load %arg1[%c63] : memref<81xf32, #tpu.memory_space<smem>>
    %149 = vector.broadcast %148 : f32 to vector<1x256xf32>
    %150 = arith.mulf %149, %139 : vector<1x256xf32>
    %151 = arith.addf %136, %150 : vector<1x256xf32>
    %152 = vector.extract_strided_slice %137 {offsets = [0, 1], sizes = [1, 256], strides = [1, 1]} : vector<1x290xf32> to vector<1x256xf32>
    %c10 = arith.constant 10 : index
    %153 = memref.load %arg1[%c10] : memref<81xf32, #tpu.memory_space<smem>>
    %154 = vector.broadcast %153 : f32 to vector<1x256xf32>
    %155 = arith.mulf %154, %152 : vector<1x256xf32>
    %156 = arith.addf %143, %155 : vector<1x256xf32>
    %c37 = arith.constant 37 : index
    %157 = memref.load %arg1[%c37] : memref<81xf32, #tpu.memory_space<smem>>
    %158 = vector.broadcast %157 : f32 to vector<1x256xf32>
    %159 = arith.mulf %158, %152 : vector<1x256xf32>
    %160 = arith.addf %147, %159 : vector<1x256xf32>
    %c64 = arith.constant 64 : index
    %161 = memref.load %arg1[%c64] : memref<81xf32, #tpu.memory_space<smem>>
    %162 = vector.broadcast %161 : f32 to vector<1x256xf32>
    %163 = arith.mulf %162, %152 : vector<1x256xf32>
    %164 = arith.addf %151, %163 : vector<1x256xf32>
    %165 = vector.extract_strided_slice %137 {offsets = [0, 2], sizes = [1, 256], strides = [1, 1]} : vector<1x290xf32> to vector<1x256xf32>
    %166 = arith.mulf %165, %6 : vector<1x256xf32>
    %c11 = arith.constant 11 : index
    %167 = memref.load %arg1[%c11] : memref<81xf32, #tpu.memory_space<smem>>
    %168 = vector.broadcast %167 : f32 to vector<1x256xf32>
    %169 = arith.mulf %168, %166 : vector<1x256xf32>
    %170 = arith.addf %156, %169 : vector<1x256xf32>
    %c38 = arith.constant 38 : index
    %171 = memref.load %arg1[%c38] : memref<81xf32, #tpu.memory_space<smem>>
    %172 = vector.broadcast %171 : f32 to vector<1x256xf32>
    %173 = arith.mulf %172, %166 : vector<1x256xf32>
    %174 = arith.addf %160, %173 : vector<1x256xf32>
    %c65 = arith.constant 65 : index
    %175 = memref.load %arg1[%c65] : memref<81xf32, #tpu.memory_space<smem>>
    %176 = vector.broadcast %175 : f32 to vector<1x256xf32>
    %177 = arith.mulf %176, %166 : vector<1x256xf32>
    %178 = arith.addf %164, %177 : vector<1x256xf32>
    %179 = vector.extract_strided_slice %137 {offsets = [0, 16], sizes = [1, 256], strides = [1, 1]} : vector<1x290xf32> to vector<1x256xf32>
    %180 = arith.mulf %179, %5 : vector<1x256xf32>
    %c12 = arith.constant 12 : index
    %181 = memref.load %arg1[%c12] : memref<81xf32, #tpu.memory_space<smem>>
    %182 = vector.broadcast %181 : f32 to vector<1x256xf32>
    %183 = arith.mulf %182, %180 : vector<1x256xf32>
    %184 = arith.addf %170, %183 : vector<1x256xf32>
    %c39 = arith.constant 39 : index
    %185 = memref.load %arg1[%c39] : memref<81xf32, #tpu.memory_space<smem>>
    %186 = vector.broadcast %185 : f32 to vector<1x256xf32>
    %187 = arith.mulf %186, %180 : vector<1x256xf32>
    %188 = arith.addf %174, %187 : vector<1x256xf32>
    %c66 = arith.constant 66 : index
    %189 = memref.load %arg1[%c66] : memref<81xf32, #tpu.memory_space<smem>>
    %190 = vector.broadcast %189 : f32 to vector<1x256xf32>
    %191 = arith.mulf %190, %180 : vector<1x256xf32>
    %192 = arith.addf %178, %191 : vector<1x256xf32>
    %193 = vector.extract_strided_slice %137 {offsets = [0, 17], sizes = [1, 256], strides = [1, 1]} : vector<1x290xf32> to vector<1x256xf32>
    %c13 = arith.constant 13 : index
    %194 = memref.load %arg1[%c13] : memref<81xf32, #tpu.memory_space<smem>>
    %195 = vector.broadcast %194 : f32 to vector<1x256xf32>
    %196 = arith.mulf %195, %193 : vector<1x256xf32>
    %197 = arith.addf %184, %196 : vector<1x256xf32>
    %c40 = arith.constant 40 : index
    %198 = memref.load %arg1[%c40] : memref<81xf32, #tpu.memory_space<smem>>
    %199 = vector.broadcast %198 : f32 to vector<1x256xf32>
    %200 = arith.mulf %199, %193 : vector<1x256xf32>
    %201 = arith.addf %188, %200 : vector<1x256xf32>
    %c67 = arith.constant 67 : index
    %202 = memref.load %arg1[%c67] : memref<81xf32, #tpu.memory_space<smem>>
    %203 = vector.broadcast %202 : f32 to vector<1x256xf32>
    %204 = arith.mulf %203, %193 : vector<1x256xf32>
    %205 = arith.addf %192, %204 : vector<1x256xf32>
    %206 = vector.extract_strided_slice %137 {offsets = [0, 18], sizes = [1, 256], strides = [1, 1]} : vector<1x290xf32> to vector<1x256xf32>
    %207 = arith.mulf %206, %6 : vector<1x256xf32>
    %c14 = arith.constant 14 : index
    %208 = memref.load %arg1[%c14] : memref<81xf32, #tpu.memory_space<smem>>
    %209 = vector.broadcast %208 : f32 to vector<1x256xf32>
    %210 = arith.mulf %209, %207 : vector<1x256xf32>
    %211 = arith.addf %197, %210 : vector<1x256xf32>
    %c41 = arith.constant 41 : index
    %212 = memref.load %arg1[%c41] : memref<81xf32, #tpu.memory_space<smem>>
    %213 = vector.broadcast %212 : f32 to vector<1x256xf32>
    %214 = arith.mulf %213, %207 : vector<1x256xf32>
    %215 = arith.addf %201, %214 : vector<1x256xf32>
    %c68 = arith.constant 68 : index
    %216 = memref.load %arg1[%c68] : memref<81xf32, #tpu.memory_space<smem>>
    %217 = vector.broadcast %216 : f32 to vector<1x256xf32>
    %218 = arith.mulf %217, %207 : vector<1x256xf32>
    %219 = arith.addf %205, %218 : vector<1x256xf32>
    %220 = vector.extract_strided_slice %137 {offsets = [0, 32], sizes = [1, 256], strides = [1, 1]} : vector<1x290xf32> to vector<1x256xf32>
    %221 = arith.mulf %220, %5 : vector<1x256xf32>
    %c15 = arith.constant 15 : index
    %222 = memref.load %arg1[%c15] : memref<81xf32, #tpu.memory_space<smem>>
    %223 = vector.broadcast %222 : f32 to vector<1x256xf32>
    %224 = arith.mulf %223, %221 : vector<1x256xf32>
    %225 = arith.addf %211, %224 : vector<1x256xf32>
    %c42 = arith.constant 42 : index
    %226 = memref.load %arg1[%c42] : memref<81xf32, #tpu.memory_space<smem>>
    %227 = vector.broadcast %226 : f32 to vector<1x256xf32>
    %228 = arith.mulf %227, %221 : vector<1x256xf32>
    %229 = arith.addf %215, %228 : vector<1x256xf32>
    %c69 = arith.constant 69 : index
    %230 = memref.load %arg1[%c69] : memref<81xf32, #tpu.memory_space<smem>>
    %231 = vector.broadcast %230 : f32 to vector<1x256xf32>
    %232 = arith.mulf %231, %221 : vector<1x256xf32>
    %233 = arith.addf %219, %232 : vector<1x256xf32>
    %234 = vector.extract_strided_slice %137 {offsets = [0, 33], sizes = [1, 256], strides = [1, 1]} : vector<1x290xf32> to vector<1x256xf32>
    %c16 = arith.constant 16 : index
    %235 = memref.load %arg1[%c16] : memref<81xf32, #tpu.memory_space<smem>>
    %236 = vector.broadcast %235 : f32 to vector<1x256xf32>
    %237 = arith.mulf %236, %234 : vector<1x256xf32>
    %238 = arith.addf %225, %237 : vector<1x256xf32>
    %c43 = arith.constant 43 : index
    %239 = memref.load %arg1[%c43] : memref<81xf32, #tpu.memory_space<smem>>
    %240 = vector.broadcast %239 : f32 to vector<1x256xf32>
    %241 = arith.mulf %240, %234 : vector<1x256xf32>
    %242 = arith.addf %229, %241 : vector<1x256xf32>
    %c70 = arith.constant 70 : index
    %243 = memref.load %arg1[%c70] : memref<81xf32, #tpu.memory_space<smem>>
    %244 = vector.broadcast %243 : f32 to vector<1x256xf32>
    %245 = arith.mulf %244, %234 : vector<1x256xf32>
    %246 = arith.addf %233, %245 : vector<1x256xf32>
    %247 = vector.extract_strided_slice %137 {offsets = [0, 34], sizes = [1, 256], strides = [1, 1]} : vector<1x290xf32> to vector<1x256xf32>
    %248 = arith.mulf %247, %6 : vector<1x256xf32>
    %c17_17 = arith.constant 17 : index
    %249 = memref.load %arg1[%c17_17] : memref<81xf32, #tpu.memory_space<smem>>
    %250 = vector.broadcast %249 : f32 to vector<1x256xf32>
    %251 = arith.mulf %250, %248 : vector<1x256xf32>
    %252 = arith.addf %238, %251 : vector<1x256xf32>
    %c44 = arith.constant 44 : index
    %253 = memref.load %arg1[%c44] : memref<81xf32, #tpu.memory_space<smem>>
    %254 = vector.broadcast %253 : f32 to vector<1x256xf32>
    %255 = arith.mulf %254, %248 : vector<1x256xf32>
    %256 = arith.addf %242, %255 : vector<1x256xf32>
    %c71 = arith.constant 71 : index
    %257 = memref.load %arg1[%c71] : memref<81xf32, #tpu.memory_space<smem>>
    %258 = vector.broadcast %257 : f32 to vector<1x256xf32>
    %259 = arith.mulf %258, %248 : vector<1x256xf32>
    %260 = arith.addf %246, %259 : vector<1x256xf32>
    %c2_18 = arith.constant 2 : index
    %c0_19 = arith.constant 0 : index
    %261 = vector.load %arg5[%c2_18, %c0_19] : memref<6x290xf32, #tpu.memory_space<vmem>>, vector<1x290xf32>
    %262 = vector.extract_strided_slice %261 {offsets = [0, 0], sizes = [1, 256], strides = [1, 1]} : vector<1x290xf32> to vector<1x256xf32>
    %263 = arith.mulf %262, %5 : vector<1x256xf32>
    %c18 = arith.constant 18 : index
    %264 = memref.load %arg1[%c18] : memref<81xf32, #tpu.memory_space<smem>>
    %265 = vector.broadcast %264 : f32 to vector<1x256xf32>
    %266 = arith.mulf %265, %263 : vector<1x256xf32>
    %267 = arith.addf %252, %266 : vector<1x256xf32>
    %c45 = arith.constant 45 : index
    %268 = memref.load %arg1[%c45] : memref<81xf32, #tpu.memory_space<smem>>
    %269 = vector.broadcast %268 : f32 to vector<1x256xf32>
    %270 = arith.mulf %269, %263 : vector<1x256xf32>
    %271 = arith.addf %256, %270 : vector<1x256xf32>
    %c72 = arith.constant 72 : index
    %272 = memref.load %arg1[%c72] : memref<81xf32, #tpu.memory_space<smem>>
    %273 = vector.broadcast %272 : f32 to vector<1x256xf32>
    %274 = arith.mulf %273, %263 : vector<1x256xf32>
    %275 = arith.addf %260, %274 : vector<1x256xf32>
    %276 = vector.extract_strided_slice %261 {offsets = [0, 1], sizes = [1, 256], strides = [1, 1]} : vector<1x290xf32> to vector<1x256xf32>
    %c19 = arith.constant 19 : index
    %277 = memref.load %arg1[%c19] : memref<81xf32, #tpu.memory_space<smem>>
    %278 = vector.broadcast %277 : f32 to vector<1x256xf32>
    %279 = arith.mulf %278, %276 : vector<1x256xf32>
    %280 = arith.addf %267, %279 : vector<1x256xf32>
    %c46 = arith.constant 46 : index
    %281 = memref.load %arg1[%c46] : memref<81xf32, #tpu.memory_space<smem>>
    %282 = vector.broadcast %281 : f32 to vector<1x256xf32>
    %283 = arith.mulf %282, %276 : vector<1x256xf32>
    %284 = arith.addf %271, %283 : vector<1x256xf32>
    %c73 = arith.constant 73 : index
    %285 = memref.load %arg1[%c73] : memref<81xf32, #tpu.memory_space<smem>>
    %286 = vector.broadcast %285 : f32 to vector<1x256xf32>
    %287 = arith.mulf %286, %276 : vector<1x256xf32>
    %288 = arith.addf %275, %287 : vector<1x256xf32>
    %289 = vector.extract_strided_slice %261 {offsets = [0, 2], sizes = [1, 256], strides = [1, 1]} : vector<1x290xf32> to vector<1x256xf32>
    %290 = arith.mulf %289, %6 : vector<1x256xf32>
    %c20 = arith.constant 20 : index
    %291 = memref.load %arg1[%c20] : memref<81xf32, #tpu.memory_space<smem>>
    %292 = vector.broadcast %291 : f32 to vector<1x256xf32>
    %293 = arith.mulf %292, %290 : vector<1x256xf32>
    %294 = arith.addf %280, %293 : vector<1x256xf32>
    %c47 = arith.constant 47 : index
    %295 = memref.load %arg1[%c47] : memref<81xf32, #tpu.memory_space<smem>>
    %296 = vector.broadcast %295 : f32 to vector<1x256xf32>
    %297 = arith.mulf %296, %290 : vector<1x256xf32>
    %298 = arith.addf %284, %297 : vector<1x256xf32>
    %c74 = arith.constant 74 : index
    %299 = memref.load %arg1[%c74] : memref<81xf32, #tpu.memory_space<smem>>
    %300 = vector.broadcast %299 : f32 to vector<1x256xf32>
    %301 = arith.mulf %300, %290 : vector<1x256xf32>
    %302 = arith.addf %288, %301 : vector<1x256xf32>
    %303 = vector.extract_strided_slice %261 {offsets = [0, 16], sizes = [1, 256], strides = [1, 1]} : vector<1x290xf32> to vector<1x256xf32>
    %304 = arith.mulf %303, %5 : vector<1x256xf32>
    %c21 = arith.constant 21 : index
    %305 = memref.load %arg1[%c21] : memref<81xf32, #tpu.memory_space<smem>>
    %306 = vector.broadcast %305 : f32 to vector<1x256xf32>
    %307 = arith.mulf %306, %304 : vector<1x256xf32>
    %308 = arith.addf %294, %307 : vector<1x256xf32>
    %c48 = arith.constant 48 : index
    %309 = memref.load %arg1[%c48] : memref<81xf32, #tpu.memory_space<smem>>
    %310 = vector.broadcast %309 : f32 to vector<1x256xf32>
    %311 = arith.mulf %310, %304 : vector<1x256xf32>
    %312 = arith.addf %298, %311 : vector<1x256xf32>
    %c75 = arith.constant 75 : index
    %313 = memref.load %arg1[%c75] : memref<81xf32, #tpu.memory_space<smem>>
    %314 = vector.broadcast %313 : f32 to vector<1x256xf32>
    %315 = arith.mulf %314, %304 : vector<1x256xf32>
    %316 = arith.addf %302, %315 : vector<1x256xf32>
    %317 = vector.extract_strided_slice %261 {offsets = [0, 17], sizes = [1, 256], strides = [1, 1]} : vector<1x290xf32> to vector<1x256xf32>
    %c22 = arith.constant 22 : index
    %318 = memref.load %arg1[%c22] : memref<81xf32, #tpu.memory_space<smem>>
    %319 = vector.broadcast %318 : f32 to vector<1x256xf32>
    %320 = arith.mulf %319, %317 : vector<1x256xf32>
    %321 = arith.addf %308, %320 : vector<1x256xf32>
    %c49 = arith.constant 49 : index
    %322 = memref.load %arg1[%c49] : memref<81xf32, #tpu.memory_space<smem>>
    %323 = vector.broadcast %322 : f32 to vector<1x256xf32>
    %324 = arith.mulf %323, %317 : vector<1x256xf32>
    %325 = arith.addf %312, %324 : vector<1x256xf32>
    %c76 = arith.constant 76 : index
    %326 = memref.load %arg1[%c76] : memref<81xf32, #tpu.memory_space<smem>>
    %327 = vector.broadcast %326 : f32 to vector<1x256xf32>
    %328 = arith.mulf %327, %317 : vector<1x256xf32>
    %329 = arith.addf %316, %328 : vector<1x256xf32>
    %330 = vector.extract_strided_slice %261 {offsets = [0, 18], sizes = [1, 256], strides = [1, 1]} : vector<1x290xf32> to vector<1x256xf32>
    %331 = arith.mulf %330, %6 : vector<1x256xf32>
    %c23 = arith.constant 23 : index
    %332 = memref.load %arg1[%c23] : memref<81xf32, #tpu.memory_space<smem>>
    %333 = vector.broadcast %332 : f32 to vector<1x256xf32>
    %334 = arith.mulf %333, %331 : vector<1x256xf32>
    %335 = arith.addf %321, %334 : vector<1x256xf32>
    %c50 = arith.constant 50 : index
    %336 = memref.load %arg1[%c50] : memref<81xf32, #tpu.memory_space<smem>>
    %337 = vector.broadcast %336 : f32 to vector<1x256xf32>
    %338 = arith.mulf %337, %331 : vector<1x256xf32>
    %339 = arith.addf %325, %338 : vector<1x256xf32>
    %c77 = arith.constant 77 : index
    %340 = memref.load %arg1[%c77] : memref<81xf32, #tpu.memory_space<smem>>
    %341 = vector.broadcast %340 : f32 to vector<1x256xf32>
    %342 = arith.mulf %341, %331 : vector<1x256xf32>
    %343 = arith.addf %329, %342 : vector<1x256xf32>
    %344 = vector.extract_strided_slice %261 {offsets = [0, 32], sizes = [1, 256], strides = [1, 1]} : vector<1x290xf32> to vector<1x256xf32>
    %345 = arith.mulf %344, %5 : vector<1x256xf32>
    %c24 = arith.constant 24 : index
    %346 = memref.load %arg1[%c24] : memref<81xf32, #tpu.memory_space<smem>>
    %347 = vector.broadcast %346 : f32 to vector<1x256xf32>
    %348 = arith.mulf %347, %345 : vector<1x256xf32>
    %349 = arith.addf %335, %348 : vector<1x256xf32>
    %c51 = arith.constant 51 : index
    %350 = memref.load %arg1[%c51] : memref<81xf32, #tpu.memory_space<smem>>
    %351 = vector.broadcast %350 : f32 to vector<1x256xf32>
    %352 = arith.mulf %351, %345 : vector<1x256xf32>
    %353 = arith.addf %339, %352 : vector<1x256xf32>
    %c78 = arith.constant 78 : index
    %354 = memref.load %arg1[%c78] : memref<81xf32, #tpu.memory_space<smem>>
    %355 = vector.broadcast %354 : f32 to vector<1x256xf32>
    %356 = arith.mulf %355, %345 : vector<1x256xf32>
    %357 = arith.addf %343, %356 : vector<1x256xf32>
    %358 = vector.extract_strided_slice %261 {offsets = [0, 33], sizes = [1, 256], strides = [1, 1]} : vector<1x290xf32> to vector<1x256xf32>
    %c25 = arith.constant 25 : index
    %359 = memref.load %arg1[%c25] : memref<81xf32, #tpu.memory_space<smem>>
    %360 = vector.broadcast %359 : f32 to vector<1x256xf32>
    %361 = arith.mulf %360, %358 : vector<1x256xf32>
    %362 = arith.addf %349, %361 : vector<1x256xf32>
    %c52 = arith.constant 52 : index
    %363 = memref.load %arg1[%c52] : memref<81xf32, #tpu.memory_space<smem>>
    %364 = vector.broadcast %363 : f32 to vector<1x256xf32>
    %365 = arith.mulf %364, %358 : vector<1x256xf32>
    %366 = arith.addf %353, %365 : vector<1x256xf32>
    %c79 = arith.constant 79 : index
    %367 = memref.load %arg1[%c79] : memref<81xf32, #tpu.memory_space<smem>>
    %368 = vector.broadcast %367 : f32 to vector<1x256xf32>
    %369 = arith.mulf %368, %358 : vector<1x256xf32>
    %370 = arith.addf %357, %369 : vector<1x256xf32>
    %371 = vector.extract_strided_slice %261 {offsets = [0, 34], sizes = [1, 256], strides = [1, 1]} : vector<1x290xf32> to vector<1x256xf32>
    %372 = arith.mulf %371, %6 : vector<1x256xf32>
    %c26 = arith.constant 26 : index
    %373 = memref.load %arg1[%c26] : memref<81xf32, #tpu.memory_space<smem>>
    %374 = vector.broadcast %373 : f32 to vector<1x256xf32>
    %375 = arith.mulf %374, %372 : vector<1x256xf32>
    %376 = arith.addf %362, %375 : vector<1x256xf32>
    %c53 = arith.constant 53 : index
    %377 = memref.load %arg1[%c53] : memref<81xf32, #tpu.memory_space<smem>>
    %378 = vector.broadcast %377 : f32 to vector<1x256xf32>
    %379 = arith.mulf %378, %372 : vector<1x256xf32>
    %380 = arith.addf %366, %379 : vector<1x256xf32>
    %c80 = arith.constant 80 : index
    %381 = memref.load %arg1[%c80] : memref<81xf32, #tpu.memory_space<smem>>
    %382 = vector.broadcast %381 : f32 to vector<1x256xf32>
    %383 = arith.mulf %382, %372 : vector<1x256xf32>
    %384 = arith.addf %370, %383 : vector<1x256xf32>
    %c0_20 = arith.constant 0 : index
    %c0_21 = arith.constant 0 : index
    %385 = vector.load %arg4[%c0_20, %c0_21] : memref<6x256xf32, #tpu.memory_space<vmem>>, vector<1x256xf32>
    tpu.vector_store %arg4[%c0_20, %c0_21], %376 {strides = array<i32>} : memref<6x256xf32, #tpu.memory_space<vmem>>, vector<1x256xf32>,
    %c1_22 = arith.constant 1 : index
    %c0_23 = arith.constant 0 : index
    %386 = vector.load %arg4[%c1_22, %c0_23] : memref<6x256xf32, #tpu.memory_space<vmem>>, vector<1x256xf32>
    tpu.vector_store %arg4[%c1_22, %c0_23], %380 {strides = array<i32>} : memref<6x256xf32, #tpu.memory_space<vmem>>, vector<1x256xf32>,
    %c2_24 = arith.constant 2 : index
    %c0_25 = arith.constant 0 : index
    %387 = vector.load %arg4[%c2_24, %c0_25] : memref<6x256xf32, #tpu.memory_space<vmem>>, vector<1x256xf32>
    tpu.vector_store %arg4[%c2_24, %c0_25], %384 {strides = array<i32>} : memref<6x256xf32, #tpu.memory_space<vmem>>, vector<1x256xf32>,
    %c0_26 = arith.constant 0 : index
    %388 = memref.load %arg2[%c0_26] : memref<3xf32, #tpu.memory_space<smem>>
    %389 = vector.broadcast %388 : f32 to vector<1x256xf32>
    %c1_27 = arith.constant 1 : index
    %390 = memref.load %arg2[%c1_27] : memref<3xf32, #tpu.memory_space<smem>>
    %391 = vector.broadcast %390 : f32 to vector<1x256xf32>
    %c2_28 = arith.constant 2 : index
    %392 = memref.load %arg2[%c2_28] : memref<3xf32, #tpu.memory_space<smem>>
    %393 = vector.broadcast %392 : f32 to vector<1x256xf32>
    %c3_29 = arith.constant 3 : index
    %c0_30 = arith.constant 0 : index
    %394 = vector.load %arg5[%c3_29, %c0_30] : memref<6x290xf32, #tpu.memory_space<vmem>>, vector<1x290xf32>
    %395 = vector.extract_strided_slice %394 {offsets = [0, 0], sizes = [1, 256], strides = [1, 1]} : vector<1x290xf32> to vector<1x256xf32>
    %396 = arith.mulf %395, %5 : vector<1x256xf32>
    %c0_31 = arith.constant 0 : index
    %397 = memref.load %arg1[%c0_31] : memref<81xf32, #tpu.memory_space<smem>>
    %398 = vector.broadcast %397 : f32 to vector<1x256xf32>
    %399 = arith.mulf %398, %396 : vector<1x256xf32>
    %400 = arith.addf %389, %399 : vector<1x256xf32>
    %c27_32 = arith.constant 27 : index
    %401 = memref.load %arg1[%c27_32] : memref<81xf32, #tpu.memory_space<smem>>
    %402 = vector.broadcast %401 : f32 to vector<1x256xf32>
    %403 = arith.mulf %402, %396 : vector<1x256xf32>
    %404 = arith.addf %391, %403 : vector<1x256xf32>
    %c54_33 = arith.constant 54 : index
    %405 = memref.load %arg1[%c54_33] : memref<81xf32, #tpu.memory_space<smem>>
    %406 = vector.broadcast %405 : f32 to vector<1x256xf32>
    %407 = arith.mulf %406, %396 : vector<1x256xf32>
    %408 = arith.addf %393, %407 : vector<1x256xf32>
    %409 = vector.extract_strided_slice %394 {offsets = [0, 1], sizes = [1, 256], strides = [1, 1]} : vector<1x290xf32> to vector<1x256xf32>
    %c1_34 = arith.constant 1 : index
    %410 = memref.load %arg1[%c1_34] : memref<81xf32, #tpu.memory_space<smem>>
    %411 = vector.broadcast %410 : f32 to vector<1x256xf32>
    %412 = arith.mulf %411, %409 : vector<1x256xf32>
    %413 = arith.addf %400, %412 : vector<1x256xf32>
    %c28_35 = arith.constant 28 : index
    %414 = memref.load %arg1[%c28_35] : memref<81xf32, #tpu.memory_space<smem>>
    %415 = vector.broadcast %414 : f32 to vector<1x256xf32>
    %416 = arith.mulf %415, %409 : vector<1x256xf32>
    %417 = arith.addf %404, %416 : vector<1x256xf32>
    %c55_36 = arith.constant 55 : index
    %418 = memref.load %arg1[%c55_36] : memref<81xf32, #tpu.memory_space<smem>>
    %419 = vector.broadcast %418 : f32 to vector<1x256xf32>
    %420 = arith.mulf %419, %409 : vector<1x256xf32>
    %421 = arith.addf %408, %420 : vector<1x256xf32>
    %422 = vector.extract_strided_slice %394 {offsets = [0, 2], sizes = [1, 256], strides = [1, 1]} : vector<1x290xf32> to vector<1x256xf32>
    %423 = arith.mulf %422, %6 : vector<1x256xf32>
    %c2_37 = arith.constant 2 : index
    %424 = memref.load %arg1[%c2_37] : memref<81xf32, #tpu.memory_space<smem>>
    %425 = vector.broadcast %424 : f32 to vector<1x256xf32>
    %426 = arith.mulf %425, %423 : vector<1x256xf32>
    %427 = arith.addf %413, %426 : vector<1x256xf32>
    %c29_38 = arith.constant 29 : index
    %428 = memref.load %arg1[%c29_38] : memref<81xf32, #tpu.memory_space<smem>>
    %429 = vector.broadcast %428 : f32 to vector<1x256xf32>
    %430 = arith.mulf %429, %423 : vector<1x256xf32>
    %431 = arith.addf %417, %430 : vector<1x256xf32>
    %c56_39 = arith.constant 56 : index
    %432 = memref.load %arg1[%c56_39] : memref<81xf32, #tpu.memory_space<smem>>
    %433 = vector.broadcast %432 : f32 to vector<1x256xf32>
    %434 = arith.mulf %433, %423 : vector<1x256xf32>
    %435 = arith.addf %421, %434 : vector<1x256xf32>
    %436 = vector.extract_strided_slice %394 {offsets = [0, 16], sizes = [1, 256], strides = [1, 1]} : vector<1x290xf32> to vector<1x256xf32>
    %437 = arith.mulf %436, %5 : vector<1x256xf32>
    %c3_40 = arith.constant 3 : index
    %438 = memref.load %arg1[%c3_40] : memref<81xf32, #tpu.memory_space<smem>>
    %439 = vector.broadcast %438 : f32 to vector<1x256xf32>
    %440 = arith.mulf %439, %437 : vector<1x256xf32>
    %441 = arith.addf %427, %440 : vector<1x256xf32>
    %c30_41 = arith.constant 30 : index
    %442 = memref.load %arg1[%c30_41] : memref<81xf32, #tpu.memory_space<smem>>
    %443 = vector.broadcast %442 : f32 to vector<1x256xf32>
    %444 = arith.mulf %443, %437 : vector<1x256xf32>
    %445 = arith.addf %431, %444 : vector<1x256xf32>
    %c57_42 = arith.constant 57 : index
    %446 = memref.load %arg1[%c57_42] : memref<81xf32, #tpu.memory_space<smem>>
    %447 = vector.broadcast %446 : f32 to vector<1x256xf32>
    %448 = arith.mulf %447, %437 : vector<1x256xf32>
    %449 = arith.addf %435, %448 : vector<1x256xf32>
    %450 = vector.extract_strided_slice %394 {offsets = [0, 17], sizes = [1, 256], strides = [1, 1]} : vector<1x290xf32> to vector<1x256xf32>
    %c4_43 = arith.constant 4 : index
    %451 = memref.load %arg1[%c4_43] : memref<81xf32, #tpu.memory_space<smem>>
    %452 = vector.broadcast %451 : f32 to vector<1x256xf32>
    %453 = arith.mulf %452, %450 : vector<1x256xf32>
    %454 = arith.addf %441, %453 : vector<1x256xf32>
    %c31_44 = arith.constant 31 : index
    %455 = memref.load %arg1[%c31_44] : memref<81xf32, #tpu.memory_space<smem>>
    %456 = vector.broadcast %455 : f32 to vector<1x256xf32>
    %457 = arith.mulf %456, %450 : vector<1x256xf32>
    %458 = arith.addf %445, %457 : vector<1x256xf32>
    %c58_45 = arith.constant 58 : index
    %459 = memref.load %arg1[%c58_45] : memref<81xf32, #tpu.memory_space<smem>>
    %460 = vector.broadcast %459 : f32 to vector<1x256xf32>
    %461 = arith.mulf %460, %450 : vector<1x256xf32>
    %462 = arith.addf %449, %461 : vector<1x256xf32>
    %463 = vector.extract_strided_slice %394 {offsets = [0, 18], sizes = [1, 256], strides = [1, 1]} : vector<1x290xf32> to vector<1x256xf32>
    %464 = arith.mulf %463, %6 : vector<1x256xf32>
    %c5_46 = arith.constant 5 : index
    %465 = memref.load %arg1[%c5_46] : memref<81xf32, #tpu.memory_space<smem>>
    %466 = vector.broadcast %465 : f32 to vector<1x256xf32>
    %467 = arith.mulf %466, %464 : vector<1x256xf32>
    %468 = arith.addf %454, %467 : vector<1x256xf32>
    %c32_47 = arith.constant 32 : index
    %469 = memref.load %arg1[%c32_47] : memref<81xf32, #tpu.memory_space<smem>>
    %470 = vector.broadcast %469 : f32 to vector<1x256xf32>
    %471 = arith.mulf %470, %464 : vector<1x256xf32>
    %472 = arith.addf %458, %471 : vector<1x256xf32>
    %c59_48 = arith.constant 59 : index
    %473 = memref.load %arg1[%c59_48] : memref<81xf32, #tpu.memory_space<smem>>
    %474 = vector.broadcast %473 : f32 to vector<1x256xf32>
    %475 = arith.mulf %474, %464 : vector<1x256xf32>
    %476 = arith.addf %462, %475 : vector<1x256xf32>
    %477 = vector.extract_strided_slice %394 {offsets = [0, 32], sizes = [1, 256], strides = [1, 1]} : vector<1x290xf32> to vector<1x256xf32>
    %478 = arith.mulf %477, %5 : vector<1x256xf32>
    %c6_49 = arith.constant 6 : index
    %479 = memref.load %arg1[%c6_49] : memref<81xf32, #tpu.memory_space<smem>>
    %480 = vector.broadcast %479 : f32 to vector<1x256xf32>
    %481 = arith.mulf %480, %478 : vector<1x256xf32>
    %482 = arith.addf %468, %481 : vector<1x256xf32>
    %c33_50 = arith.constant 33 : index
    %483 = memref.load %arg1[%c33_50] : memref<81xf32, #tpu.memory_space<smem>>
    %484 = vector.broadcast %483 : f32 to vector<1x256xf32>
    %485 = arith.mulf %484, %478 : vector<1x256xf32>
    %486 = arith.addf %472, %485 : vector<1x256xf32>
    %c60_51 = arith.constant 60 : index
    %487 = memref.load %arg1[%c60_51] : memref<81xf32, #tpu.memory_space<smem>>
    %488 = vector.broadcast %487 : f32 to vector<1x256xf32>
    %489 = arith.mulf %488, %478 : vector<1x256xf32>
    %490 = arith.addf %476, %489 : vector<1x256xf32>
    %491 = vector.extract_strided_slice %394 {offsets = [0, 33], sizes = [1, 256], strides = [1, 1]} : vector<1x290xf32> to vector<1x256xf32>
    %c7_52 = arith.constant 7 : index
    %492 = memref.load %arg1[%c7_52] : memref<81xf32, #tpu.memory_space<smem>>
    %493 = vector.broadcast %492 : f32 to vector<1x256xf32>
    %494 = arith.mulf %493, %491 : vector<1x256xf32>
    %495 = arith.addf %482, %494 : vector<1x256xf32>
    %c34_53 = arith.constant 34 : index
    %496 = memref.load %arg1[%c34_53] : memref<81xf32, #tpu.memory_space<smem>>
    %497 = vector.broadcast %496 : f32 to vector<1x256xf32>
    %498 = arith.mulf %497, %491 : vector<1x256xf32>
    %499 = arith.addf %486, %498 : vector<1x256xf32>
    %c61_54 = arith.constant 61 : index
    %500 = memref.load %arg1[%c61_54] : memref<81xf32, #tpu.memory_space<smem>>
    %501 = vector.broadcast %500 : f32 to vector<1x256xf32>
    %502 = arith.mulf %501, %491 : vector<1x256xf32>
    %503 = arith.addf %490, %502 : vector<1x256xf32>
    %504 = vector.extract_strided_slice %394 {offsets = [0, 34], sizes = [1, 256], strides = [1, 1]} : vector<1x290xf32> to vector<1x256xf32>
    %505 = arith.mulf %504, %6 : vector<1x256xf32>
    %c8_55 = arith.constant 8 : index
    %506 = memref.load %arg1[%c8_55] : memref<81xf32, #tpu.memory_space<smem>>
    %507 = vector.broadcast %506 : f32 to vector<1x256xf32>
    %508 = arith.mulf %507, %505 : vector<1x256xf32>
    %509 = arith.addf %495, %508 : vector<1x256xf32>
    %c35_56 = arith.constant 35 : index
    %510 = memref.load %arg1[%c35_56] : memref<81xf32, #tpu.memory_space<smem>>
    %511 = vector.broadcast %510 : f32 to vector<1x256xf32>
    %512 = arith.mulf %511, %505 : vector<1x256xf32>
    %513 = arith.addf %499, %512 : vector<1x256xf32>
    %c62_57 = arith.constant 62 : index
    %514 = memref.load %arg1[%c62_57] : memref<81xf32, #tpu.memory_space<smem>>
    %515 = vector.broadcast %514 : f32 to vector<1x256xf32>
    %516 = arith.mulf %515, %505 : vector<1x256xf32>
    %517 = arith.addf %503, %516 : vector<1x256xf32>
    %c4_58 = arith.constant 4 : index
    %c0_59 = arith.constant 0 : index
    %518 = vector.load %arg5[%c4_58, %c0_59] : memref<6x290xf32, #tpu.memory_space<vmem>>, vector<1x290xf32>
    %519 = vector.extract_strided_slice %518 {offsets = [0, 0], sizes = [1, 256], strides = [1, 1]} : vector<1x290xf32> to vector<1x256xf32>
    %520 = arith.mulf %519, %5 : vector<1x256xf32>
    %c9_60 = arith.constant 9 : index
    %521 = memref.load %arg1[%c9_60] : memref<81xf32, #tpu.memory_space<smem>>
    %522 = vector.broadcast %521 : f32 to vector<1x256xf32>
    %523 = arith.mulf %522, %520 : vector<1x256xf32>
    %524 = arith.addf %509, %523 : vector<1x256xf32>
    %c36_61 = arith.constant 36 : index
    %525 = memref.load %arg1[%c36_61] : memref<81xf32, #tpu.memory_space<smem>>
    %526 = vector.broadcast %525 : f32 to vector<1x256xf32>
    %527 = arith.mulf %526, %520 : vector<1x256xf32>
    %528 = arith.addf %513, %527 : vector<1x256xf32>
    %c63_62 = arith.constant 63 : index
    %529 = memref.load %arg1[%c63_62] : memref<81xf32, #tpu.memory_space<smem>>
    %530 = vector.broadcast %529 : f32 to vector<1x256xf32>
    %531 = arith.mulf %530, %520 : vector<1x256xf32>
    %532 = arith.addf %517, %531 : vector<1x256xf32>
    %533 = vector.extract_strided_slice %518 {offsets = [0, 1], sizes = [1, 256], strides = [1, 1]} : vector<1x290xf32> to vector<1x256xf32>
    %c10_63 = arith.constant 10 : index
    %534 = memref.load %arg1[%c10_63] : memref<81xf32, #tpu.memory_space<smem>>
    %535 = vector.broadcast %534 : f32 to vector<1x256xf32>
    %536 = arith.mulf %535, %533 : vector<1x256xf32>
    %537 = arith.addf %524, %536 : vector<1x256xf32>
    %c37_64 = arith.constant 37 : index
    %538 = memref.load %arg1[%c37_64] : memref<81xf32, #tpu.memory_space<smem>>
    %539 = vector.broadcast %538 : f32 to vector<1x256xf32>
    %540 = arith.mulf %539, %533 : vector<1x256xf32>
    %541 = arith.addf %528, %540 : vector<1x256xf32>
    %c64_65 = arith.constant 64 : index
    %542 = memref.load %arg1[%c64_65] : memref<81xf32, #tpu.memory_space<smem>>
    %543 = vector.broadcast %542 : f32 to vector<1x256xf32>
    %544 = arith.mulf %543, %533 : vector<1x256xf32>
    %545 = arith.addf %532, %544 : vector<1x256xf32>
    %546 = vector.extract_strided_slice %518 {offsets = [0, 2], sizes = [1, 256], strides = [1, 1]} : vector<1x290xf32> to vector<1x256xf32>
    %547 = arith.mulf %546, %6 : vector<1x256xf32>
    %c11_66 = arith.constant 11 : index
    %548 = memref.load %arg1[%c11_66] : memref<81xf32, #tpu.memory_space<smem>>
    %549 = vector.broadcast %548 : f32 to vector<1x256xf32>
    %550 = arith.mulf %549, %547 : vector<1x256xf32>
    %551 = arith.addf %537, %550 : vector<1x256xf32>
    %c38_67 = arith.constant 38 : index
    %552 = memref.load %arg1[%c38_67] : memref<81xf32, #tpu.memory_space<smem>>
    %553 = vector.broadcast %552 : f32 to vector<1x256xf32>
    %554 = arith.mulf %553, %547 : vector<1x256xf32>
    %555 = arith.addf %541, %554 : vector<1x256xf32>
    %c65_68 = arith.constant 65 : index
    %556 = memref.load %arg1[%c65_68] : memref<81xf32, #tpu.memory_space<smem>>
    %557 = vector.broadcast %556 : f32 to vector<1x256xf32>
    %558 = arith.mulf %557, %547 : vector<1x256xf32>
    %559 = arith.addf %545, %558 : vector<1x256xf32>
    %560 = vector.extract_strided_slice %518 {offsets = [0, 16], sizes = [1, 256], strides = [1, 1]} : vector<1x290xf32> to vector<1x256xf32>
    %561 = arith.mulf %560, %5 : vector<1x256xf32>
    %c12_69 = arith.constant 12 : index
    %562 = memref.load %arg1[%c12_69] : memref<81xf32, #tpu.memory_space<smem>>
    %563 = vector.broadcast %562 : f32 to vector<1x256xf32>
    %564 = arith.mulf %563, %561 : vector<1x256xf32>
    %565 = arith.addf %551, %564 : vector<1x256xf32>
    %c39_70 = arith.constant 39 : index
    %566 = memref.load %arg1[%c39_70] : memref<81xf32, #tpu.memory_space<smem>>
    %567 = vector.broadcast %566 : f32 to vector<1x256xf32>
    %568 = arith.mulf %567, %561 : vector<1x256xf32>
    %569 = arith.addf %555, %568 : vector<1x256xf32>
    %c66_71 = arith.constant 66 : index
    %570 = memref.load %arg1[%c66_71] : memref<81xf32, #tpu.memory_space<smem>>
    %571 = vector.broadcast %570 : f32 to vector<1x256xf32>
    %572 = arith.mulf %571, %561 : vector<1x256xf32>
    %573 = arith.addf %559, %572 : vector<1x256xf32>
    %574 = vector.extract_strided_slice %518 {offsets = [0, 17], sizes = [1, 256], strides = [1, 1]} : vector<1x290xf32> to vector<1x256xf32>
    %c13_72 = arith.constant 13 : index
    %575 = memref.load %arg1[%c13_72] : memref<81xf32, #tpu.memory_space<smem>>
    %576 = vector.broadcast %575 : f32 to vector<1x256xf32>
    %577 = arith.mulf %576, %574 : vector<1x256xf32>
    %578 = arith.addf %565, %577 : vector<1x256xf32>
    %c40_73 = arith.constant 40 : index
    %579 = memref.load %arg1[%c40_73] : memref<81xf32, #tpu.memory_space<smem>>
    %580 = vector.broadcast %579 : f32 to vector<1x256xf32>
    %581 = arith.mulf %580, %574 : vector<1x256xf32>
    %582 = arith.addf %569, %581 : vector<1x256xf32>
    %c67_74 = arith.constant 67 : index
    %583 = memref.load %arg1[%c67_74] : memref<81xf32, #tpu.memory_space<smem>>
    %584 = vector.broadcast %583 : f32 to vector<1x256xf32>
    %585 = arith.mulf %584, %574 : vector<1x256xf32>
    %586 = arith.addf %573, %585 : vector<1x256xf32>
    %587 = vector.extract_strided_slice %518 {offsets = [0, 18], sizes = [1, 256], strides = [1, 1]} : vector<1x290xf32> to vector<1x256xf32>
    %588 = arith.mulf %587, %6 : vector<1x256xf32>
    %c14_75 = arith.constant 14 : index
    %589 = memref.load %arg1[%c14_75] : memref<81xf32, #tpu.memory_space<smem>>
    %590 = vector.broadcast %589 : f32 to vector<1x256xf32>
    %591 = arith.mulf %590, %588 : vector<1x256xf32>
    %592 = arith.addf %578, %591 : vector<1x256xf32>
    %c41_76 = arith.constant 41 : index
    %593 = memref.load %arg1[%c41_76] : memref<81xf32, #tpu.memory_space<smem>>
    %594 = vector.broadcast %593 : f32 to vector<1x256xf32>
    %595 = arith.mulf %594, %588 : vector<1x256xf32>
    %596 = arith.addf %582, %595 : vector<1x256xf32>
    %c68_77 = arith.constant 68 : index
    %597 = memref.load %arg1[%c68_77] : memref<81xf32, #tpu.memory_space<smem>>
    %598 = vector.broadcast %597 : f32 to vector<1x256xf32>
    %599 = arith.mulf %598, %588 : vector<1x256xf32>
    %600 = arith.addf %586, %599 : vector<1x256xf32>
    %601 = vector.extract_strided_slice %518 {offsets = [0, 32], sizes = [1, 256], strides = [1, 1]} : vector<1x290xf32> to vector<1x256xf32>
    %602 = arith.mulf %601, %5 : vector<1x256xf32>
    %c15_78 = arith.constant 15 : index
    %603 = memref.load %arg1[%c15_78] : memref<81xf32, #tpu.memory_space<smem>>
    %604 = vector.broadcast %603 : f32 to vector<1x256xf32>
    %605 = arith.mulf %604, %602 : vector<1x256xf32>
    %606 = arith.addf %592, %605 : vector<1x256xf32>
    %c42_79 = arith.constant 42 : index
    %607 = memref.load %arg1[%c42_79] : memref<81xf32, #tpu.memory_space<smem>>
    %608 = vector.broadcast %607 : f32 to vector<1x256xf32>
    %609 = arith.mulf %608, %602 : vector<1x256xf32>
    %610 = arith.addf %596, %609 : vector<1x256xf32>
    %c69_80 = arith.constant 69 : index
    %611 = memref.load %arg1[%c69_80] : memref<81xf32, #tpu.memory_space<smem>>
    %612 = vector.broadcast %611 : f32 to vector<1x256xf32>
    %613 = arith.mulf %612, %602 : vector<1x256xf32>
    %614 = arith.addf %600, %613 : vector<1x256xf32>
    %615 = vector.extract_strided_slice %518 {offsets = [0, 33], sizes = [1, 256], strides = [1, 1]} : vector<1x290xf32> to vector<1x256xf32>
    %c16_81 = arith.constant 16 : index
    %616 = memref.load %arg1[%c16_81] : memref<81xf32, #tpu.memory_space<smem>>
    %617 = vector.broadcast %616 : f32 to vector<1x256xf32>
    %618 = arith.mulf %617, %615 : vector<1x256xf32>
    %619 = arith.addf %606, %618 : vector<1x256xf32>
    %c43_82 = arith.constant 43 : index
    %620 = memref.load %arg1[%c43_82] : memref<81xf32, #tpu.memory_space<smem>>
    %621 = vector.broadcast %620 : f32 to vector<1x256xf32>
    %622 = arith.mulf %621, %615 : vector<1x256xf32>
    %623 = arith.addf %610, %622 : vector<1x256xf32>
    %c70_83 = arith.constant 70 : index
    %624 = memref.load %arg1[%c70_83] : memref<81xf32, #tpu.memory_space<smem>>
    %625 = vector.broadcast %624 : f32 to vector<1x256xf32>
    %626 = arith.mulf %625, %615 : vector<1x256xf32>
    %627 = arith.addf %614, %626 : vector<1x256xf32>
    %628 = vector.extract_strided_slice %518 {offsets = [0, 34], sizes = [1, 256], strides = [1, 1]} : vector<1x290xf32> to vector<1x256xf32>
    %629 = arith.mulf %628, %6 : vector<1x256xf32>
    %c17_84 = arith.constant 17 : index
    %630 = memref.load %arg1[%c17_84] : memref<81xf32, #tpu.memory_space<smem>>
    %631 = vector.broadcast %630 : f32 to vector<1x256xf32>
    %632 = arith.mulf %631, %629 : vector<1x256xf32>
    %633 = arith.addf %619, %632 : vector<1x256xf32>
    %c44_85 = arith.constant 44 : index
    %634 = memref.load %arg1[%c44_85] : memref<81xf32, #tpu.memory_space<smem>>
    %635 = vector.broadcast %634 : f32 to vector<1x256xf32>
    %636 = arith.mulf %635, %629 : vector<1x256xf32>
    %637 = arith.addf %623, %636 : vector<1x256xf32>
    %c71_86 = arith.constant 71 : index
    %638 = memref.load %arg1[%c71_86] : memref<81xf32, #tpu.memory_space<smem>>
    %639 = vector.broadcast %638 : f32 to vector<1x256xf32>
    %640 = arith.mulf %639, %629 : vector<1x256xf32>
    %641 = arith.addf %627, %640 : vector<1x256xf32>
    %c5_87 = arith.constant 5 : index
    %c0_88 = arith.constant 0 : index
    %642 = vector.load %arg5[%c5_87, %c0_88] : memref<6x290xf32, #tpu.memory_space<vmem>>, vector<1x290xf32>
    %643 = vector.extract_strided_slice %642 {offsets = [0, 0], sizes = [1, 256], strides = [1, 1]} : vector<1x290xf32> to vector<1x256xf32>
    %644 = arith.mulf %643, %5 : vector<1x256xf32>
    %c18_89 = arith.constant 18 : index
    %645 = memref.load %arg1[%c18_89] : memref<81xf32, #tpu.memory_space<smem>>
    %646 = vector.broadcast %645 : f32 to vector<1x256xf32>
    %647 = arith.mulf %646, %644 : vector<1x256xf32>
    %648 = arith.addf %633, %647 : vector<1x256xf32>
    %c45_90 = arith.constant 45 : index
    %649 = memref.load %arg1[%c45_90] : memref<81xf32, #tpu.memory_space<smem>>
    %650 = vector.broadcast %649 : f32 to vector<1x256xf32>
    %651 = arith.mulf %650, %644 : vector<1x256xf32>
    %652 = arith.addf %637, %651 : vector<1x256xf32>
    %c72_91 = arith.constant 72 : index
    %653 = memref.load %arg1[%c72_91] : memref<81xf32, #tpu.memory_space<smem>>
    %654 = vector.broadcast %653 : f32 to vector<1x256xf32>
    %655 = arith.mulf %654, %644 : vector<1x256xf32>
    %656 = arith.addf %641, %655 : vector<1x256xf32>
    %657 = vector.extract_strided_slice %642 {offsets = [0, 1], sizes = [1, 256], strides = [1, 1]} : vector<1x290xf32> to vector<1x256xf32>
    %c19_92 = arith.constant 19 : index
    %658 = memref.load %arg1[%c19_92] : memref<81xf32, #tpu.memory_space<smem>>
    %659 = vector.broadcast %658 : f32 to vector<1x256xf32>
    %660 = arith.mulf %659, %657 : vector<1x256xf32>
    %661 = arith.addf %648, %660 : vector<1x256xf32>
    %c46_93 = arith.constant 46 : index
    %662 = memref.load %arg1[%c46_93] : memref<81xf32, #tpu.memory_space<smem>>
    %663 = vector.broadcast %662 : f32 to vector<1x256xf32>
    %664 = arith.mulf %663, %657 : vector<1x256xf32>
    %665 = arith.addf %652, %664 : vector<1x256xf32>
    %c73_94 = arith.constant 73 : index
    %666 = memref.load %arg1[%c73_94] : memref<81xf32, #tpu.memory_space<smem>>
    %667 = vector.broadcast %666 : f32 to vector<1x256xf32>
    %668 = arith.mulf %667, %657 : vector<1x256xf32>
    %669 = arith.addf %656, %668 : vector<1x256xf32>
    %670 = vector.extract_strided_slice %642 {offsets = [0, 2], sizes = [1, 256], strides = [1, 1]} : vector<1x290xf32> to vector<1x256xf32>
    %671 = arith.mulf %670, %6 : vector<1x256xf32>
    %c20_95 = arith.constant 20 : index
    %672 = memref.load %arg1[%c20_95] : memref<81xf32, #tpu.memory_space<smem>>
    %673 = vector.broadcast %672 : f32 to vector<1x256xf32>
    %674 = arith.mulf %673, %671 : vector<1x256xf32>
    %675 = arith.addf %661, %674 : vector<1x256xf32>
    %c47_96 = arith.constant 47 : index
    %676 = memref.load %arg1[%c47_96] : memref<81xf32, #tpu.memory_space<smem>>
    %677 = vector.broadcast %676 : f32 to vector<1x256xf32>
    %678 = arith.mulf %677, %671 : vector<1x256xf32>
    %679 = arith.addf %665, %678 : vector<1x256xf32>
    %c74_97 = arith.constant 74 : index
    %680 = memref.load %arg1[%c74_97] : memref<81xf32, #tpu.memory_space<smem>>
    %681 = vector.broadcast %680 : f32 to vector<1x256xf32>
    %682 = arith.mulf %681, %671 : vector<1x256xf32>
    %683 = arith.addf %669, %682 : vector<1x256xf32>
    %684 = vector.extract_strided_slice %642 {offsets = [0, 16], sizes = [1, 256], strides = [1, 1]} : vector<1x290xf32> to vector<1x256xf32>
    %685 = arith.mulf %684, %5 : vector<1x256xf32>
    %c21_98 = arith.constant 21 : index
    %686 = memref.load %arg1[%c21_98] : memref<81xf32, #tpu.memory_space<smem>>
    %687 = vector.broadcast %686 : f32 to vector<1x256xf32>
    %688 = arith.mulf %687, %685 : vector<1x256xf32>
    %689 = arith.addf %675, %688 : vector<1x256xf32>
    %c48_99 = arith.constant 48 : index
    %690 = memref.load %arg1[%c48_99] : memref<81xf32, #tpu.memory_space<smem>>
    %691 = vector.broadcast %690 : f32 to vector<1x256xf32>
    %692 = arith.mulf %691, %685 : vector<1x256xf32>
    %693 = arith.addf %679, %692 : vector<1x256xf32>
    %c75_100 = arith.constant 75 : index
    %694 = memref.load %arg1[%c75_100] : memref<81xf32, #tpu.memory_space<smem>>
    %695 = vector.broadcast %694 : f32 to vector<1x256xf32>
    %696 = arith.mulf %695, %685 : vector<1x256xf32>
    %697 = arith.addf %683, %696 : vector<1x256xf32>
    %698 = vector.extract_strided_slice %642 {offsets = [0, 17], sizes = [1, 256], strides = [1, 1]} : vector<1x290xf32> to vector<1x256xf32>
    %c22_101 = arith.constant 22 : index
    %699 = memref.load %arg1[%c22_101] : memref<81xf32, #tpu.memory_space<smem>>
    %700 = vector.broadcast %699 : f32 to vector<1x256xf32>
    %701 = arith.mulf %700, %698 : vector<1x256xf32>
    %702 = arith.addf %689, %701 : vector<1x256xf32>
    %c49_102 = arith.constant 49 : index
    %703 = memref.load %arg1[%c49_102] : memref<81xf32, #tpu.memory_space<smem>>
    %704 = vector.broadcast %703 : f32 to vector<1x256xf32>
    %705 = arith.mulf %704, %698 : vector<1x256xf32>
    %706 = arith.addf %693, %705 : vector<1x256xf32>
    %c76_103 = arith.constant 76 : index
    %707 = memref.load %arg1[%c76_103] : memref<81xf32, #tpu.memory_space<smem>>
    %708 = vector.broadcast %707 : f32 to vector<1x256xf32>
    %709 = arith.mulf %708, %698 : vector<1x256xf32>
    %710 = arith.addf %697, %709 : vector<1x256xf32>
    %711 = vector.extract_strided_slice %642 {offsets = [0, 18], sizes = [1, 256], strides = [1, 1]} : vector<1x290xf32> to vector<1x256xf32>
    %712 = arith.mulf %711, %6 : vector<1x256xf32>
    %c23_104 = arith.constant 23 : index
    %713 = memref.load %arg1[%c23_104] : memref<81xf32, #tpu.memory_space<smem>>
    %714 = vector.broadcast %713 : f32 to vector<1x256xf32>
    %715 = arith.mulf %714, %712 : vector<1x256xf32>
    %716 = arith.addf %702, %715 : vector<1x256xf32>
    %c50_105 = arith.constant 50 : index
    %717 = memref.load %arg1[%c50_105] : memref<81xf32, #tpu.memory_space<smem>>
    %718 = vector.broadcast %717 : f32 to vector<1x256xf32>
    %719 = arith.mulf %718, %712 : vector<1x256xf32>
    %720 = arith.addf %706, %719 : vector<1x256xf32>
    %c77_106 = arith.constant 77 : index
    %721 = memref.load %arg1[%c77_106] : memref<81xf32, #tpu.memory_space<smem>>
    %722 = vector.broadcast %721 : f32 to vector<1x256xf32>
    %723 = arith.mulf %722, %712 : vector<1x256xf32>
    %724 = arith.addf %710, %723 : vector<1x256xf32>
    %725 = vector.extract_strided_slice %642 {offsets = [0, 32], sizes = [1, 256], strides = [1, 1]} : vector<1x290xf32> to vector<1x256xf32>
    %726 = arith.mulf %725, %5 : vector<1x256xf32>
    %c24_107 = arith.constant 24 : index
    %727 = memref.load %arg1[%c24_107] : memref<81xf32, #tpu.memory_space<smem>>
    %728 = vector.broadcast %727 : f32 to vector<1x256xf32>
    %729 = arith.mulf %728, %726 : vector<1x256xf32>
    %730 = arith.addf %716, %729 : vector<1x256xf32>
    %c51_108 = arith.constant 51 : index
    %731 = memref.load %arg1[%c51_108] : memref<81xf32, #tpu.memory_space<smem>>
    %732 = vector.broadcast %731 : f32 to vector<1x256xf32>
    %733 = arith.mulf %732, %726 : vector<1x256xf32>
    %734 = arith.addf %720, %733 : vector<1x256xf32>
    %c78_109 = arith.constant 78 : index
    %735 = memref.load %arg1[%c78_109] : memref<81xf32, #tpu.memory_space<smem>>
    %736 = vector.broadcast %735 : f32 to vector<1x256xf32>
    %737 = arith.mulf %736, %726 : vector<1x256xf32>
    %738 = arith.addf %724, %737 : vector<1x256xf32>
    %739 = vector.extract_strided_slice %642 {offsets = [0, 33], sizes = [1, 256], strides = [1, 1]} : vector<1x290xf32> to vector<1x256xf32>
    %c25_110 = arith.constant 25 : index
    %740 = memref.load %arg1[%c25_110] : memref<81xf32, #tpu.memory_space<smem>>
    %741 = vector.broadcast %740 : f32 to vector<1x256xf32>
    %742 = arith.mulf %741, %739 : vector<1x256xf32>
    %743 = arith.addf %730, %742 : vector<1x256xf32>
    %c52_111 = arith.constant 52 : index
    %744 = memref.load %arg1[%c52_111] : memref<81xf32, #tpu.memory_space<smem>>
    %745 = vector.broadcast %744 : f32 to vector<1x256xf32>
    %746 = arith.mulf %745, %739 : vector<1x256xf32>
    %747 = arith.addf %734, %746 : vector<1x256xf32>
    %c79_112 = arith.constant 79 : index
    %748 = memref.load %arg1[%c79_112] : memref<81xf32, #tpu.memory_space<smem>>
    %749 = vector.broadcast %748 : f32 to vector<1x256xf32>
    %750 = arith.mulf %749, %739 : vector<1x256xf32>
    %751 = arith.addf %738, %750 : vector<1x256xf32>
    %752 = vector.extract_strided_slice %642 {offsets = [0, 34], sizes = [1, 256], strides = [1, 1]} : vector<1x290xf32> to vector<1x256xf32>
    %753 = arith.mulf %752, %6 : vector<1x256xf32>
    %c26_113 = arith.constant 26 : index
    %754 = memref.load %arg1[%c26_113] : memref<81xf32, #tpu.memory_space<smem>>
    %755 = vector.broadcast %754 : f32 to vector<1x256xf32>
    %756 = arith.mulf %755, %753 : vector<1x256xf32>
    %757 = arith.addf %743, %756 : vector<1x256xf32>
    %c53_114 = arith.constant 53 : index
    %758 = memref.load %arg1[%c53_114] : memref<81xf32, #tpu.memory_space<smem>>
    %759 = vector.broadcast %758 : f32 to vector<1x256xf32>
    %760 = arith.mulf %759, %753 : vector<1x256xf32>
    %761 = arith.addf %747, %760 : vector<1x256xf32>
    %c80_115 = arith.constant 80 : index
    %762 = memref.load %arg1[%c80_115] : memref<81xf32, #tpu.memory_space<smem>>
    %763 = vector.broadcast %762 : f32 to vector<1x256xf32>
    %764 = arith.mulf %763, %753 : vector<1x256xf32>
    %765 = arith.addf %751, %764 : vector<1x256xf32>
    %c3_116 = arith.constant 3 : index
    %c0_117 = arith.constant 0 : index
    %766 = vector.load %arg4[%c3_116, %c0_117] : memref<6x256xf32, #tpu.memory_space<vmem>>, vector<1x256xf32>
    tpu.vector_store %arg4[%c3_116, %c0_117], %757 {strides = array<i32>} : memref<6x256xf32, #tpu.memory_space<vmem>>, vector<1x256xf32>,
    %c4_118 = arith.constant 4 : index
    %c0_119 = arith.constant 0 : index
    %767 = vector.load %arg4[%c4_118, %c0_119] : memref<6x256xf32, #tpu.memory_space<vmem>>, vector<1x256xf32>
    tpu.vector_store %arg4[%c4_118, %c0_119], %761 {strides = array<i32>} : memref<6x256xf32, #tpu.memory_space<vmem>>, vector<1x256xf32>,
    %c5_120 = arith.constant 5 : index
    %c0_121 = arith.constant 0 : index
    %768 = vector.load %arg4[%c5_120, %c0_121] : memref<6x256xf32, #tpu.memory_space<vmem>>, vector<1x256xf32>
    tpu.vector_store %arg4[%c5_120, %c0_121], %765 {strides = array<i32>} : memref<6x256xf32, #tpu.memory_space<vmem>>, vector<1x256xf32>,
    return
  }
}

</mosaic_0001>

<llo_original>
// kernel: tpu_custom_call.1
$region0: #{tpu_custom_call.1}
  #allocation0 [shape = 'u32[]', space=smem, size = 0x4, offset = 0x4, fixed_abs, tag = 'smem constant byte address 0x4 - core index']
  #allocation1 [shape = 'u32[144,128]{1,0:T(1,128)}', space=vmem, size = 0x12000, scoped, tag = 'internal scratch']
  #allocation2 [shape = 'f32[6,290]{1,0:T(8,128)}', space=vmem, size = 0x3000, scoped, tag = 'scratch operand']
  %s0 = inlined_call_operand.hbm [shape: f32[6,256], index: 0, kind: input, shape index: {}]
  %s1 = inlined_call_operand.vmem [shape: f32[81], index: 1, kind: input, shape index: {}]
  %s2 = inlined_call_operand.vmem [shape: f32[3], index: 2, kind: input, shape index: {}]
  %s3 = inlined_call_operand.vmem [shape: f32[2,256], index: 3, kind: input, shape index: {}]
  %s4 = inlined_call_operand.hbm [shape: f32[6,256], index: 4, kind: output, shape index: {}]
  %s5 = sld [smem:[#allocation0]]
  $region38: #{tpu_custom_call.1} parent=0
    _
  %s7 = ssub.s32 1, %s5
  %s8 = scalar_select 0, %s7, %s5
  $region1: #{tpu_custom_call.1} parent=0
    #allocation3 [shape = 'u8[8192]{0}', space=vmem, size = 0x2000, scoped, tag = 'input window, operand 0, single buffered']
    #allocation4 [shape = 's32[1]{0}', space=sflag, size = 0x4, scoped, tag = 'scoped memory for tpu_custom_call.1']
    #allocation5 [shape = 's32[1]{0}', space=sflag, size = 0x4, scoped, tag = 'scoped memory for tpu_custom_call.1']
    #allocation6 [shape = 's32[1]{0}', space=sflag, size = 0x4, scoped, tag = 'scoped memory for tpu_custom_call.1']
    #allocation7 [shape = 'u8[512]{0}', space=smem, size = 0x200, scoped, tag = 'input window, operand 1, single buffered']
    #allocation8 [shape = 'u8[512]{0}', space=smem, size = 0x200, scoped, tag = 'input window, operand 2, single buffered']
    #allocation9 [shape = 's32[1]{0}', space=sflag, size = 0x4, scoped, tag = 'scoped memory for tpu_custom_call.1']
    #allocation10 [shape = 'u8[8192]{0}', space=vmem, size = 0x2000, scoped, tag = 'output window, operand 0, single buffered']
    %9 = vsyncpa [#allocation4], 0
    %10 = vsyncpa [#allocation6], 0
    %11 = vsyncpa [#allocation9], 0
    %12 = vsyncpa [#allocation5], 0
    // Predicated region
    $region2: #{tpu_custom_call.1} parent=1 // pred_check
      _
    $region3: #{tpu_custom_call.1} parent=1 // pred_check_branch
      %14 = sbr.rel (0) target = $region5
    $region4: #{tpu_custom_call.1} parent=1 // pred_region
      %s16 = ssub.s32 256, 256
      %17 = vsyncadd [#allocation4], %s16
      %s19 = sshll.u32 [#allocation3], 4
      %s20 = int_to_ptr.vmem [resolvable:$true] %s19
      %22 = dma.hbm_to_vmem [thread:$0]  %s0, 256, %s20, [#allocation4]
    $region5: #{tpu_custom_call.1} parent=1 // pred_fallthru
      _
    // Predicated region
    $region6: #{tpu_custom_call.1} parent=1 // pred_check
      _
    $region7: #{tpu_custom_call.1} parent=1 // pred_check_branch
      %24 = sbr.rel (0) target = $region9
    $region8: #{tpu_custom_call.1} parent=1 // pred_region
      %s26 = ssub.s32 16, 16
      %27 = vsyncadd [#allocation6], %s26
      %s29 = sshll.u32 %s1, 4
      %s30 = int_to_ptr.vmem [resolvable:$true] %s29
      %32 = dma.vmem_to_smem %s30, 16, [#allocation7], [#allocation6]
    $region9: #{tpu_custom_call.1} parent=1 // pred_fallthru
      _
    // Predicated region
    $region10: #{tpu_custom_call.1} parent=1 // pred_check
      _
    $region11: #{tpu_custom_call.1} parent=1 // pred_check_branch
      %34 = sbr.rel (0) target = $region13
    $region12: #{tpu_custom_call.1} parent=1 // pred_region
      %s36 = ssub.s32 16, 16
      %37 = vsyncadd [#allocation9], %s36
      %s39 = sshll.u32 %s2, 4
      %s40 = int_to_ptr.vmem [resolvable:$true] %s39
      %42 = dma.vmem_to_smem %s40, 16, [#allocation8], [#allocation9]
    $region13: #{tpu_custom_call.1} parent=1 // pred_fallthru
      _
    // Predicated region
    $region14: #{tpu_custom_call.1} parent=1 // pred_check
      _
    $region15: #{tpu_custom_call.1} parent=1 // pred_check_branch
      %44 = sbr.rel (0) target = $region17
    $region16: #{tpu_custom_call.1} parent=1 // pred_region
      _
    $region17: #{tpu_custom_call.1} parent=1 // pred_fallthru
      _
    // Predicated region
    $region18: #{tpu_custom_call.1} parent=1 // pred_check
      _
    $region19: #{tpu_custom_call.1} parent=1 // pred_check_branch
      %46 = sbr.rel (0) target = $region21
    $region20: #{tpu_custom_call.1} parent=1 // pred_region
      %47 = dma.done [#allocation4], 256
    $region21: #{tpu_custom_call.1} parent=1 // pred_fallthru
      _
    // Predicated region
    $region22: #{tpu_custom_call.1} parent=1 // pred_check
      _
    $region23: #{tpu_custom_call.1} parent=1 // pred_check_branch
      %49 = sbr.rel (0) target = $region25
    $region24: #{tpu_custom_call.1} parent=1 // pred_region
      %50 = dma.done [#allocation6], 16
    $region25: #{tpu_custom_call.1} parent=1 // pred_fallthru
      _
    // Predicated region
    $region26: #{tpu_custom_call.1} parent=1 // pred_check
      _
    $region27: #{tpu_custom_call.1} parent=1 // pred_check_branch
      %52 = sbr.rel (0) target = $region29
    $region28: #{tpu_custom_call.1} parent=1 // pred_region
      %53 = dma.done [#allocation9], 16
    $region29: #{tpu_custom_call.1} parent=1 // pred_fallthru
      _
    %54 = sfence
    %vm55 = vcmask 136192
    %56 = vst.msk [vmem:[#allocation2] sm:$0x3f] %vm55, 0.0
    %vm57 = vcmask 275592
    %58 = vst.msk [vmem:[#allocation2 + $0x10] sm:$0x3f] %vm57, 0.0
    %v59 = vld [vmem:[#allocation3] sm:$0x3f]
    %v60 = vld [vmem:[#allocation3 + $0x8] sm:$0x3f]
    %63 = vrot.lane.b32.xlu0 %v59, 17
    %v64 = vpop.permute.xlu0 %63
    %65 = vrot.lane.b32.xlu0 %v60, 17
    %v66 = vpop.permute.xlu0 %65
    %vm67 = vcmask 138240
    %v68 = vsel %vm67, %v64, %v66
    %vm72 = vcmask 1045640
    %73 = vst.msk [vmem:[#allocation2] sm:$0x3f] %vm72, %v64
    %74 = vst [vmem:[#allocation2 + $0x8] sm:$0x3f] %v68
    %75 = vst.msk [vmem:[#allocation2 + $0x10] sm:$0x3f] %vm55, %v66
    %v76 = vld [vmem:[%s3] ss:$2 sm:$0x3]
    %s77 = scalar_lea.vmem %s3, 1
    %v78 = vld [vmem:[%s77] ss:$2 sm:$0x3]
    %s79 = sld [smem:[#allocation8]]
    %v80 = vstv %s79
    %s81 = sld [smem:[#allocation8 + $0x1]]
    %v82 = vstv %s81
    %s83 = sld [smem:[#allocation8 + $0x2]]
    %v84 = vstv %s83
    %v85 = vld [vmem:[#allocation2] ss:$8 sm:$0x7]
    %v86 = vmul.f32 %v85, %v76
    %s87 = sld [smem:[#allocation7]]
    %v88 = vstv %s87
    %v89 = vmul.f32 %v88, %v86
    %v90 = vadd.f32 %v80, %v89
    %s91 = sld [smem:[#allocation7 + $0x1b]]
    %v92 = vstv %s91
    %v93 = vmul.f32 %v92, %v86
    %v94 = vadd.f32 %v82, %v93
    %s95 = sld [smem:[#allocation7 + $0x36]]
    %v96 = vstv %s95
    %v97 = vmul.f32 %v96, %v86
    %v98 = vadd.f32 %v84, %v97
    %s99 = sld [smem:[#allocation7 + $0x1]]
    %v100 = vstv %s99
    %v101 = vmul.f32 %v100, %v85
    %103 = vrot.lane.b32.xlu0 %v101, 127
    %v104 = vpop.permute.xlu0 %103
    %v105 = vrot.slane %v104, 1
    %vm106 = vcmask 1039360
    %v107 = vsel %vm106, %v104, %v105
    %v109 = vadd.f32 %v90, %v107
    %s110 = sld [smem:[#allocation7 + $0x1c]]
    %v111 = vstv %s110
    %v112 = vmul.f32 %v111, %v85
    %114 = vrot.lane.b32.xlu0 %v112, 127
    %v115 = vpop.permute.xlu0 %114
    %v116 = vrot.slane %v115, 1
    %v117 = vsel %vm106, %v115, %v116
    %v119 = vadd.f32 %v94, %v117
    %s120 = sld [smem:[#allocation7 + $0x37]]
    %v121 = vstv %s120
    %v122 = vmul.f32 %v121, %v85
    %124 = vrot.lane.b32.xlu0 %v122, 127
    %v125 = vpop.permute.xlu0 %124
    %v126 = vrot.slane %v125, 1
    %v127 = vsel %vm106, %v125, %v126
    %v129 = vadd.f32 %v98, %v127
    %131 = vrot.lane.b32.xlu0 %v78, 2
    %v132 = vpop.permute.xlu0 %131
    %v133 = vrot.slane %v132, 7
    %vm134 = vcmask 15360
    %v135 = vsel %vm134, %v133, %v132
    %v137 = vmul.f32 %v85, %v135
    %s138 = sld [smem:[#allocation7 + $0x2]]
    %v139 = vstv %s138
    %v140 = vmul.f32 %v139, %v137
    %142 = vrot.lane.b32.xlu0 %v140, 126
    %v143 = vpop.permute.xlu0 %142
    %v144 = vrot.slane %v143, 1
    %vm145 = vcmask 1031168
    %v146 = vsel %vm145, %v143, %v144
    %v148 = vadd.f32 %v109, %v146
    %s149 = sld [smem:[#allocation7 + $0x1d]]
    %v150 = vstv %s149
    %v151 = vmul.f32 %v150, %v137
    %153 = vrot.lane.b32.xlu0 %v151, 126
    %v154 = vpop.permute.xlu0 %153
    %v155 = vrot.slane %v154, 1
    %v156 = vsel %vm145, %v154, %v155
    %v158 = vadd.f32 %v119, %v156
    %s159 = sld [smem:[#allocation7 + $0x38]]
    %v160 = vstv %s159
    %v161 = vmul.f32 %v160, %v137
    %163 = vrot.lane.b32.xlu0 %v161, 126
    %v164 = vpop.permute.xlu0 %163
    %v165 = vrot.slane %v164, 1
    %v166 = vsel %vm145, %v164, %v165
    %v168 = vadd.f32 %v129, %v166
    %170 = vrot.lane.b32.xlu0 %v76, 16
    %v171 = vpop.permute.xlu0 %170
    %v172 = vrot.slane %v171, 7
    %vm173 = vcmask 130048
    %v174 = vsel %vm173, %v172, %v171
    %v176 = vmul.f32 %v85, %v174
    %s177 = sld [smem:[#allocation7 + $0x3]]
    %v178 = vstv %s177
    %v179 = vmul.f32 %v178, %v176
    %181 = vrot.lane.b32.xlu0 %v179, 112
    %v182 = vpop.permute.xlu0 %181
    %v183 = vrot.slane %v182, 1
    %vm184 = vcmask 916480
    %v185 = vsel %vm184, %v182, %v183
    %v187 = vadd.f32 %v148, %v185
    %s188 = sld [smem:[#allocation7 + $0x1e]]
    %v189 = vstv %s188
    %v190 = vmul.f32 %v189, %v176
    %192 = vrot.lane.b32.xlu0 %v190, 112
    %v193 = vpop.permute.xlu0 %192
    %v194 = vrot.slane %v193, 1
    %v195 = vsel %vm184, %v193, %v194
    %v197 = vadd.f32 %v158, %v195
    %s198 = sld [smem:[#allocation7 + $0x39]]
    %v199 = vstv %s198
    %v200 = vmul.f32 %v199, %v176
    %202 = vrot.lane.b32.xlu0 %v200, 112
    %v203 = vpop.permute.xlu0 %202
    %v204 = vrot.slane %v203, 1
    %v205 = vsel %vm184, %v203, %v204
    %v207 = vadd.f32 %v168, %v205
    %s208 = sld [smem:[#allocation7 + $0x4]]
    %v209 = vstv %s208
    %v210 = vmul.f32 %v209, %v85
    %212 = vrot.lane.b32.xlu0 %v210, 111
    %v213 = vpop.permute.xlu0 %212
    %v214 = vrot.slane %v213, 1
    %vm215 = vcmask 908288
    %v216 = vsel %vm215, %v213, %v214
    %v218 = vadd.f32 %v187, %v216
    %s219 = sld [smem:[#allocation7 + $0x1f]]
    %v220 = vstv %s219
    %v221 = vmul.f32 %v220, %v85
    %223 = vrot.lane.b32.xlu0 %v221, 111
    %v224 = vpop.permute.xlu0 %223
    %v225 = vrot.slane %v224, 1
    %v226 = vsel %vm215, %v224, %v225
    %v228 = vadd.f32 %v197, %v226
    %s229 = sld [smem:[#allocation7 + $0x3a]]
    %v230 = vstv %s229
    %v231 = vmul.f32 %v230, %v85
    %233 = vrot.lane.b32.xlu0 %v231, 111
    %v234 = vpop.permute.xlu0 %233
    %v235 = vrot.slane %v234, 1
    %v236 = vsel %vm215, %v234, %v235
    %v238 = vadd.f32 %v207, %v236
    %239 = vrot.lane.b32.xlu0 %v78, 18
    %v240 = vpop.permute.xlu0 %239
    %v241 = vrot.slane %v240, 7
    %vm242 = vcmask 146432
    %v243 = vsel %vm242, %v241, %v240
    %v245 = vmul.f32 %v85, %v243
    %s246 = sld [smem:[#allocation7 + $0x5]]
    %v247 = vstv %s246
    %v248 = vmul.f32 %v247, %v245
    %250 = vrot.lane.b32.xlu0 %v248, 110
    %v251 = vpop.permute.xlu0 %250
    %v252 = vrot.slane %v251, 1
    %vm253 = vcmask 900096
    %v254 = vsel %vm253, %v251, %v252
    %v256 = vadd.f32 %v218, %v254
    %s257 = sld [smem:[#allocation7 + $0x20]]
    %v258 = vstv %s257
    %v259 = vmul.f32 %v258, %v245
    %261 = vrot.lane.b32.xlu0 %v259, 110
    %v262 = vpop.permute.xlu0 %261
    %v263 = vrot.slane %v262, 1
    %v264 = vsel %vm253, %v262, %v263
    %v266 = vadd.f32 %v228, %v264
    %s267 = sld [smem:[#allocation7 + $0x3b]]
    %v268 = vstv %s267
    %v269 = vmul.f32 %v268, %v245
    %271 = vrot.lane.b32.xlu0 %v269, 110
    %v272 = vpop.permute.xlu0 %271
    %v273 = vrot.slane %v272, 1
    %v274 = vsel %vm253, %v272, %v273
    %v276 = vadd.f32 %v238, %v274
    %277 = vrot.lane.b32.xlu0 %v76, 32
    %v278 = vpop.permute.xlu0 %277
    %v279 = vrot.slane %v278, 7
    %vm280 = vcmask 261120
    %v281 = vsel %vm280, %v279, %v278
    %v283 = vmul.f32 %v85, %v281
    %s284 = sld [smem:[#allocation7 + $0x6]]
    %v285 = vstv %s284
    %v286 = vmul.f32 %v285, %v283
    %288 = vrot.lane.b32.xlu0 %v286, 96
    %v289 = vpop.permute.xlu0 %288
    %v290 = vrot.slane %v289, 1
    %vm291 = vcmask 785408
    %v292 = vsel %vm291, %v289, %v290
    %v294 = vadd.f32 %v256, %v292
    %s295 = sld [smem:[#allocation7 + $0x21]]
    %v296 = vstv %s295
    %v297 = vmul.f32 %v296, %v283
    %299 = vrot.lane.b32.xlu0 %v297, 96
    %v300 = vpop.permute.xlu0 %299
    %v301 = vrot.slane %v300, 1
    %v302 = vsel %vm291, %v300, %v301
    %v304 = vadd.f32 %v266, %v302
    %s305 = sld [smem:[#allocation7 + $0x3c]]
    %v306 = vstv %s305
    %v307 = vmul.f32 %v306, %v283
    %309 = vrot.lane.b32.xlu0 %v307, 96
    %v310 = vpop.permute.xlu0 %309
    %v311 = vrot.slane %v310, 1
    %v312 = vsel %vm291, %v310, %v311
    %v314 = vadd.f32 %v276, %v312
    %s315 = sld [smem:[#allocation7 + $0x7]]
    %v316 = vstv %s315
    %v317 = vmul.f32 %v316, %v85
    %319 = vrot.lane.b32.xlu0 %v317, 95
    %v320 = vpop.permute.xlu0 %319
    %v321 = vrot.slane %v320, 1
    %vm322 = vcmask 777216
    %v323 = vsel %vm322, %v320, %v321
    %v325 = vadd.f32 %v294, %v323
    %s326 = sld [smem:[#allocation7 + $0x22]]
    %v327 = vstv %s326
    %v328 = vmul.f32 %v327, %v85
    %330 = vrot.lane.b32.xlu0 %v328, 95
    %v331 = vpop.permute.xlu0 %330
    %v332 = vrot.slane %v331, 1
    %v333 = vsel %vm322, %v331, %v332
    %v335 = vadd.f32 %v304, %v333
    %s336 = sld [smem:[#allocation7 + $0x3d]]
    %v337 = vstv %s336
    %v338 = vmul.f32 %v337, %v85
    %340 = vrot.lane.b32.xlu0 %v338, 95
    %v341 = vpop.permute.xlu0 %340
    %v342 = vrot.slane %v341, 1
    %v343 = vsel %vm322, %v341, %v342
    %v345 = vadd.f32 %v314, %v343
    %346 = vrot.lane.b32.xlu0 %v78, 34
    %v347 = vpop.permute.xlu0 %346
    %v348 = vrot.slane %v347, 7
    %vm349 = vcmask 277504
    %v350 = vsel %vm349, %v348, %v347
    %v352 = vmul.f32 %v85, %v350
    %s353 = sld [smem:[#allocation7 + $0x8]]
    %v354 = vstv %s353
    %v355 = vmul.f32 %v354, %v352
    %357 = vrot.lane.b32.xlu0 %v355, 94
    %v358 = vpop.permute.xlu0 %357
    %v359 = vrot.slane %v358, 1
    %vm360 = vcmask 769024
    %v361 = vsel %vm360, %v358, %v359
    %v363 = vadd.f32 %v325, %v361
    %s364 = sld [smem:[#allocation7 + $0x23]]
    %v365 = vstv %s364
    %v366 = vmul.f32 %v365, %v352
    %368 = vrot.lane.b32.xlu0 %v366, 94
    %v369 = vpop.permute.xlu0 %368
    %v370 = vrot.slane %v369, 1
    %v371 = vsel %vm360, %v369, %v370
    %v373 = vadd.f32 %v335, %v371
    %s374 = sld [smem:[#allocation7 + $0x3e]]
    %v375 = vstv %s374
    %v376 = vmul.f32 %v375, %v352
    %378 = vrot.lane.b32.xlu0 %v376, 94
    %v379 = vpop.permute.xlu0 %378
    %v380 = vrot.slane %v379, 1
    %v381 = vsel %vm360, %v379, %v380
    %v383 = vadd.f32 %v345, %v381
    %s384 = scalar_lea.vmem [#allocation2], 1
    %v385 = vld [vmem:[%s384] ss:$8 sm:$0x7]
    %v386 = vmul.f32 %v385, %v76
    %s387 = sld [smem:[#allocation7 + $0x9]]
    %v388 = vstv %s387
    %v389 = vmul.f32 %v388, %v386
    %v390 = vadd.f32 %v363, %v389
    %s391 = sld [smem:[#allocation7 + $0x24]]
    %v392 = vstv %s391
    %v393 = vmul.f32 %v392, %v386
    %v394 = vadd.f32 %v373, %v393
    %s395 = sld [smem:[#allocation7 + $0x3f]]
    %v396 = vstv %s395
    %v397 = vmul.f32 %v396, %v386
    %v398 = vadd.f32 %v383, %v397
    %s399 = sld [smem:[#allocation7 + $0xa]]
    %v400 = vstv %s399
    %v401 = vmul.f32 %v400, %v385
    %403 = vrot.lane.b32.xlu0 %v401, 127
    %v404 = vpop.permute.xlu0 %403
    %v405 = vrot.slane %v404, 1
    %v406 = vsel %vm106, %v404, %v405
    %v408 = vadd.f32 %v390, %v406
    %s409 = sld [smem:[#allocation7 + $0x25]]
    %v410 = vstv %s409
    %v411 = vmul.f32 %v410, %v385
    %413 = vrot.lane.b32.xlu0 %v411, 127
    %v414 = vpop.permute.xlu0 %413
    %v415 = vrot.slane %v414, 1
    %v416 = vsel %vm106, %v414, %v415
    %v418 = vadd.f32 %v394, %v416
    %s419 = sld [smem:[#allocation7 + $0x40]]
    %v420 = vstv %s419
    %v421 = vmul.f32 %v420, %v385
    %423 = vrot.lane.b32.xlu0 %v421, 127
    %v424 = vpop.permute.xlu0 %423
    %v425 = vrot.slane %v424, 1
    %v426 = vsel %vm106, %v424, %v425
    %v428 = vadd.f32 %v398, %v426
    %v429 = vmul.f32 %v385, %v135
    %s430 = sld [smem:[#allocation7 + $0xb]]
    %v431 = vstv %s430
    %v432 = vmul.f32 %v431, %v429
    %434 = vrot.lane.b32.xlu0 %v432, 126
    %v435 = vpop.permute.xlu0 %434
    %v436 = vrot.slane %v435, 1
    %v437 = vsel %vm145, %v435, %v436
    %v439 = vadd.f32 %v408, %v437
    %s440 = sld [smem:[#allocation7 + $0x26]]
    %v441 = vstv %s440
    %v442 = vmul.f32 %v441, %v429
    %444 = vrot.lane.b32.xlu0 %v442, 126
    %v445 = vpop.permute.xlu0 %444
    %v446 = vrot.slane %v445, 1
    %v447 = vsel %vm145, %v445, %v446
    %v449 = vadd.f32 %v418, %v447
    %s450 = sld [smem:[#allocation7 + $0x41]]
    %v451 = vstv %s450
    %v452 = vmul.f32 %v451, %v429
    %454 = vrot.lane.b32.xlu0 %v452, 126
    %v455 = vpop.permute.xlu0 %454
    %v456 = vrot.slane %v455, 1
    %v457 = vsel %vm145, %v455, %v456
    %v459 = vadd.f32 %v428, %v457
    %v460 = vmul.f32 %v385, %v174
    %s461 = sld [smem:[#allocation7 + $0xc]]
    %v462 = vstv %s461
    %v463 = vmul.f32 %v462, %v460
    %465 = vrot.lane.b32.xlu0 %v463, 112
    %v466 = vpop.permute.xlu0 %465
    %v467 = vrot.slane %v466, 1
    %v468 = vsel %vm184, %v466, %v467
    %v470 = vadd.f32 %v439, %v468
    %s471 = sld [smem:[#allocation7 + $0x27]]
    %v472 = vstv %s471
    %v473 = vmul.f32 %v472, %v460
    %475 = vrot.lane.b32.xlu0 %v473, 112
    %v476 = vpop.permute.xlu0 %475
    %v477 = vrot.slane %v476, 1
    %v478 = vsel %vm184, %v476, %v477
    %v480 = vadd.f32 %v449, %v478
    %s481 = sld [smem:[#allocation7 + $0x42]]
    %v482 = vstv %s481
    %v483 = vmul.f32 %v482, %v460
    %485 = vrot.lane.b32.xlu0 %v483, 112
    %v486 = vpop.permute.xlu0 %485
    %v487 = vrot.slane %v486, 1
    %v488 = vsel %vm184, %v486, %v487
    %v490 = vadd.f32 %v459, %v488
    %s491 = sld [smem:[#allocation7 + $0xd]]
    %v492 = vstv %s491
    %v493 = vmul.f32 %v492, %v385
    %495 = vrot.lane.b32.xlu0 %v493, 111
    %v496 = vpop.permute.xlu0 %495
    %v497 = vrot.slane %v496, 1
    %v498 = vsel %vm215, %v496, %v497
    %v500 = vadd.f32 %v470, %v498
    %s501 = sld [smem:[#allocation7 + $0x28]]
    %v502 = vstv %s501
    %v503 = vmul.f32 %v502, %v385
    %505 = vrot.lane.b32.xlu0 %v503, 111
    %v506 = vpop.permute.xlu0 %505
    %v507 = vrot.slane %v506, 1
    %v508 = vsel %vm215, %v506, %v507
    %v510 = vadd.f32 %v480, %v508
    %s511 = sld [smem:[#allocation7 + $0x43]]
    %v512 = vstv %s511
    %v513 = vmul.f32 %v512, %v385
    %515 = vrot.lane.b32.xlu0 %v513, 111
    %v516 = vpop.permute.xlu0 %515
    %v517 = vrot.slane %v516, 1
    %v518 = vsel %vm215, %v516, %v517
    %v520 = vadd.f32 %v490, %v518
    %v521 = vmul.f32 %v385, %v243
    %s522 = sld [smem:[#allocation7 + $0xe]]
    %v523 = vstv %s522
    %v524 = vmul.f32 %v523, %v521
    %526 = vrot.lane.b32.xlu0 %v524, 110
    %v527 = vpop.permute.xlu0 %526
    %v528 = vrot.slane %v527, 1
    %v529 = vsel %vm253, %v527, %v528
    %v531 = vadd.f32 %v500, %v529
    %s532 = sld [smem:[#allocation7 + $0x29]]
    %v533 = vstv %s532
    %v534 = vmul.f32 %v533, %v521
    %536 = vrot.lane.b32.xlu0 %v534, 110
    %v537 = vpop.permute.xlu0 %536
    %v538 = vrot.slane %v537, 1
    %v539 = vsel %vm253, %v537, %v538
    %v541 = vadd.f32 %v510, %v539
    %s542 = sld [smem:[#allocation7 + $0x44]]
    %v543 = vstv %s542
    %v544 = vmul.f32 %v543, %v521
    %546 = vrot.lane.b32.xlu0 %v544, 110
    %v547 = vpop.permute.xlu0 %546
    %v548 = vrot.slane %v547, 1
    %v549 = vsel %vm253, %v547, %v548
    %v551 = vadd.f32 %v520, %v549
    %v552 = vmul.f32 %v385, %v281
    %s553 = sld [smem:[#allocation7 + $0xf]]
    %v554 = vstv %s553
    %v555 = vmul.f32 %v554, %v552
    %557 = vrot.lane.b32.xlu0 %v555, 96
    %v558 = vpop.permute.xlu0 %557
    %v559 = vrot.slane %v558, 1
    %v560 = vsel %vm291, %v558, %v559
    %v562 = vadd.f32 %v531, %v560
    %s563 = sld [smem:[#allocation7 + $0x2a]]
    %v564 = vstv %s563
    %v565 = vmul.f32 %v564, %v552
    %567 = vrot.lane.b32.xlu0 %v565, 96
    %v568 = vpop.permute.xlu0 %567
    %v569 = vrot.slane %v568, 1
    %v570 = vsel %vm291, %v568, %v569
    %v572 = vadd.f32 %v541, %v570
    %s573 = sld [smem:[#allocation7 + $0x45]]
    %v574 = vstv %s573
    %v575 = vmul.f32 %v574, %v552
    %577 = vrot.lane.b32.xlu0 %v575, 96
    %v578 = vpop.permute.xlu0 %577
    %v579 = vrot.slane %v578, 1
    %v580 = vsel %vm291, %v578, %v579
    %v582 = vadd.f32 %v551, %v580
    %s583 = sld [smem:[#allocation7 + $0x10]]
    %v584 = vstv %s583
    %v585 = vmul.f32 %v584, %v385
    %587 = vrot.lane.b32.xlu0 %v585, 95
    %v588 = vpop.permute.xlu0 %587
    %v589 = vrot.slane %v588, 1
    %v590 = vsel %vm322, %v588, %v589
    %v592 = vadd.f32 %v562, %v590
    %s593 = sld [smem:[#allocation7 + $0x2b]]
    %v594 = vstv %s593
    %v595 = vmul.f32 %v594, %v385
    %597 = vrot.lane.b32.xlu0 %v595, 95
    %v598 = vpop.permute.xlu0 %597
    %v599 = vrot.slane %v598, 1
    %v600 = vsel %vm322, %v598, %v599
    %v602 = vadd.f32 %v572, %v600
    %s603 = sld [smem:[#allocation7 + $0x46]]
    %v604 = vstv %s603
    %v605 = vmul.f32 %v604, %v385
    %607 = vrot.lane.b32.xlu0 %v605, 95
    %v608 = vpop.permute.xlu0 %607
    %v609 = vrot.slane %v608, 1
    %v610 = vsel %vm322, %v608, %v609
    %v612 = vadd.f32 %v582, %v610
    %v613 = vmul.f32 %v385, %v350
    %s614 = sld [smem:[#allocation7 + $0x11]]
    %v615 = vstv %s614
    %v616 = vmul.f32 %v615, %v613
    %618 = vrot.lane.b32.xlu0 %v616, 94
    %v619 = vpop.permute.xlu0 %618
    %v620 = vrot.slane %v619, 1
    %v621 = vsel %vm360, %v619, %v620
    %v623 = vadd.f32 %v592, %v621
    %s624 = sld [smem:[#allocation7 + $0x2c]]
    %v625 = vstv %s624
    %v626 = vmul.f32 %v625, %v613
    %628 = vrot.lane.b32.xlu0 %v626, 94
    %v629 = vpop.permute.xlu0 %628
    %v630 = vrot.slane %v629, 1
    %v631 = vsel %vm360, %v629, %v630
    %v633 = vadd.f32 %v602, %v631
    %s634 = sld [smem:[#allocation7 + $0x47]]
    %v635 = vstv %s634
    %v636 = vmul.f32 %v635, %v613
    %638 = vrot.lane.b32.xlu0 %v636, 94
    %v639 = vpop.permute.xlu0 %638
    %v640 = vrot.slane %v639, 1
    %v641 = vsel %vm360, %v639, %v640
    %v643 = vadd.f32 %v612, %v641
    %s644 = scalar_lea.vmem [#allocation2], 2
    %v645 = vld [vmem:[%s644] ss:$8 sm:$0x7]
    %v646 = vmul.f32 %v645, %v76
    %s647 = sld [smem:[#allocation7 + $0x12]]
    %v648 = vstv %s647
    %v649 = vmul.f32 %v648, %v646
    %v650 = vadd.f32 %v623, %v649
    %s651 = sld [smem:[#allocation7 + $0x2d]]
    %v652 = vstv %s651
    %v653 = vmul.f32 %v652, %v646
    %v654 = vadd.f32 %v633, %v653
    %s655 = sld [smem:[#allocation7 + $0x48]]
    %v656 = vstv %s655
    %v657 = vmul.f32 %v656, %v646
    %v658 = vadd.f32 %v643, %v657
    %s659 = sld [smem:[#allocation7 + $0x13]]
    %v660 = vstv %s659
    %v661 = vmul.f32 %v660, %v645
    %663 = vrot.lane.b32.xlu0 %v661, 127
    %v664 = vpop.permute.xlu0 %663
    %v665 = vrot.slane %v664, 1
    %v666 = vsel %vm106, %v664, %v665
    %v668 = vadd.f32 %v650, %v666
    %s669 = sld [smem:[#allocation7 + $0x2e]]
    %v670 = vstv %s669
    %v671 = vmul.f32 %v670, %v645
    %673 = vrot.lane.b32.xlu0 %v671, 127
    %v674 = vpop.permute.xlu0 %673
    %v675 = vrot.slane %v674, 1
    %v676 = vsel %vm106, %v674, %v675
    %v678 = vadd.f32 %v654, %v676
    %s679 = sld [smem:[#allocation7 + $0x49]]
    %v680 = vstv %s679
    %v681 = vmul.f32 %v680, %v645
    %683 = vrot.lane.b32.xlu0 %v681, 127
    %v684 = vpop.permute.xlu0 %683
    %v685 = vrot.slane %v684, 1
    %v686 = vsel %vm106, %v684, %v685
    %v688 = vadd.f32 %v658, %v686
    %v689 = vmul.f32 %v645, %v135
    %s690 = sld [smem:[#allocation7 + $0x14]]
    %v691 = vstv %s690
    %v692 = vmul.f32 %v691, %v689
    %694 = vrot.lane.b32.xlu0 %v692, 126
    %v695 = vpop.permute.xlu0 %694
    %v696 = vrot.slane %v695, 1
    %v697 = vsel %vm145, %v695, %v696
    %v699 = vadd.f32 %v668, %v697
    %s700 = sld [smem:[#allocation7 + $0x2f]]
    %v701 = vstv %s700
    %v702 = vmul.f32 %v701, %v689
    %704 = vrot.lane.b32.xlu0 %v702, 126
    %v705 = vpop.permute.xlu0 %704
    %v706 = vrot.slane %v705, 1
    %v707 = vsel %vm145, %v705, %v706
    %v709 = vadd.f32 %v678, %v707
    %s710 = sld [smem:[#allocation7 + $0x4a]]
    %v711 = vstv %s710
    %v712 = vmul.f32 %v711, %v689
    %714 = vrot.lane.b32.xlu0 %v712, 126
    %v715 = vpop.permute.xlu0 %714
    %v716 = vrot.slane %v715, 1
    %v717 = vsel %vm145, %v715, %v716
    %v719 = vadd.f32 %v688, %v717
    %v720 = vmul.f32 %v645, %v174
    %s721 = sld [smem:[#allocation7 + $0x15]]
    %v722 = vstv %s721
    %v723 = vmul.f32 %v722, %v720
    %725 = vrot.lane.b32.xlu0 %v723, 112
    %v726 = vpop.permute.xlu0 %725
    %v727 = vrot.slane %v726, 1
    %v728 = vsel %vm184, %v726, %v727
    %v730 = vadd.f32 %v699, %v728
    %s731 = sld [smem:[#allocation7 + $0x30]]
    %v732 = vstv %s731
    %v733 = vmul.f32 %v732, %v720
    %735 = vrot.lane.b32.xlu0 %v733, 112
    %v736 = vpop.permute.xlu0 %735
    %v737 = vrot.slane %v736, 1
    %v738 = vsel %vm184, %v736, %v737
    %v740 = vadd.f32 %v709, %v738
    %s741 = sld [smem:[#allocation7 + $0x4b]]
    %v742 = vstv %s741
    %v743 = vmul.f32 %v742, %v720
    %745 = vrot.lane.b32.xlu0 %v743, 112
    %v746 = vpop.permute.xlu0 %745
    %v747 = vrot.slane %v746, 1
    %v748 = vsel %vm184, %v746, %v747
    %v750 = vadd.f32 %v719, %v748
    %s751 = sld [smem:[#allocation7 + $0x16]]
    %v752 = vstv %s751
    %v753 = vmul.f32 %v752, %v645
    %755 = vrot.lane.b32.xlu0 %v753, 111
    %v756 = vpop.permute.xlu0 %755
    %v757 = vrot.slane %v756, 1
    %v758 = vsel %vm215, %v756, %v757
    %v760 = vadd.f32 %v730, %v758
    %s761 = sld [smem:[#allocation7 + $0x31]]
    %v762 = vstv %s761
    %v763 = vmul.f32 %v762, %v645
    %765 = vrot.lane.b32.xlu0 %v763, 111
    %v766 = vpop.permute.xlu0 %765
    %v767 = vrot.slane %v766, 1
    %v768 = vsel %vm215, %v766, %v767
    %v770 = vadd.f32 %v740, %v768
    %s771 = sld [smem:[#allocation7 + $0x4c]]
    %v772 = vstv %s771
    %v773 = vmul.f32 %v772, %v645
    %775 = vrot.lane.b32.xlu0 %v773, 111
    %v776 = vpop.permute.xlu0 %775
    %v777 = vrot.slane %v776, 1
    %v778 = vsel %vm215, %v776, %v777
    %v780 = vadd.f32 %v750, %v778
    %v781 = vmul.f32 %v645, %v243
    %s782 = sld [smem:[#allocation7 + $0x17]]
    %v783 = vstv %s782
    %v784 = vmul.f32 %v783, %v781
    %786 = vrot.lane.b32.xlu0 %v784, 110
    %v787 = vpop.permute.xlu0 %786
    %v788 = vrot.slane %v787, 1
    %v789 = vsel %vm253, %v787, %v788
    %v791 = vadd.f32 %v760, %v789
    %s792 = sld [smem:[#allocation7 + $0x32]]
    %v793 = vstv %s792
    %v794 = vmul.f32 %v793, %v781
    %796 = vrot.lane.b32.xlu0 %v794, 110
    %v797 = vpop.permute.xlu0 %796
    %v798 = vrot.slane %v797, 1
    %v799 = vsel %vm253, %v797, %v798
    %v801 = vadd.f32 %v770, %v799
    %s802 = sld [smem:[#allocation7 + $0x4d]]
    %v803 = vstv %s802
    %v804 = vmul.f32 %v803, %v781
    %806 = vrot.lane.b32.xlu0 %v804, 110
    %v807 = vpop.permute.xlu0 %806
    %v808 = vrot.slane %v807, 1
    %v809 = vsel %vm253, %v807, %v808
    %v811 = vadd.f32 %v780, %v809
    %v812 = vmul.f32 %v645, %v281
    %s813 = sld [smem:[#allocation7 + $0x18]]
    %v814 = vstv %s813
    %v815 = vmul.f32 %v814, %v812
    %817 = vrot.lane.b32.xlu0 %v815, 96
    %v818 = vpop.permute.xlu0 %817
    %v819 = vrot.slane %v818, 1
    %v820 = vsel %vm291, %v818, %v819
    %v822 = vadd.f32 %v791, %v820
    %s823 = sld [smem:[#allocation7 + $0x33]]
    %v824 = vstv %s823
    %v825 = vmul.f32 %v824, %v812
    %827 = vrot.lane.b32.xlu0 %v825, 96
    %v828 = vpop.permute.xlu0 %827
    %v829 = vrot.slane %v828, 1
    %v830 = vsel %vm291, %v828, %v829
    %v832 = vadd.f32 %v801, %v830
    %s833 = sld [smem:[#allocation7 + $0x4e]]
    %v834 = vstv %s833
    %v835 = vmul.f32 %v834, %v812
    %837 = vrot.lane.b32.xlu0 %v835, 96
    %v838 = vpop.permute.xlu0 %837
    %v839 = vrot.slane %v838, 1
    %v840 = vsel %vm291, %v838, %v839
    %v842 = vadd.f32 %v811, %v840
    %s843 = sld [smem:[#allocation7 + $0x19]]
    %v844 = vstv %s843
    %v845 = vmul.f32 %v844, %v645
    %847 = vrot.lane.b32.xlu0 %v845, 95
    %v848 = vpop.permute.xlu0 %847
    %v849 = vrot.slane %v848, 1
    %v850 = vsel %vm322, %v848, %v849
    %v852 = vadd.f32 %v822, %v850
    %s853 = sld [smem:[#allocation7 + $0x34]]
    %v854 = vstv %s853
    %v855 = vmul.f32 %v854, %v645
    %857 = vrot.lane.b32.xlu0 %v855, 95
    %v858 = vpop.permute.xlu0 %857
    %v859 = vrot.slane %v858, 1
    %v860 = vsel %vm322, %v858, %v859
    %v862 = vadd.f32 %v832, %v860
    %s863 = sld [smem:[#allocation7 + $0x4f]]
    %v864 = vstv %s863
    %v865 = vmul.f32 %v864, %v645
    %867 = vrot.lane.b32.xlu0 %v865, 95
    %v868 = vpop.permute.xlu0 %867
    %v869 = vrot.slane %v868, 1
    %v870 = vsel %vm322, %v868, %v869
    %v872 = vadd.f32 %v842, %v870
    %v873 = vmul.f32 %v645, %v350
    %s874 = sld [smem:[#allocation7 + $0x1a]]
    %v875 = vstv %s874
    %v876 = vmul.f32 %v875, %v873
    %878 = vrot.lane.b32.xlu0 %v876, 94
    %v879 = vpop.permute.xlu0 %878
    %v880 = vrot.slane %v879, 1
    %v881 = vsel %vm360, %v879, %v880
    %v883 = vadd.f32 %v852, %v881
    %s884 = sld [smem:[#allocation7 + $0x35]]
    %v885 = vstv %s884
    %v886 = vmul.f32 %v885, %v873
    %888 = vrot.lane.b32.xlu0 %v886, 94
    %v889 = vpop.permute.xlu0 %888
    %v890 = vrot.slane %v889, 1
    %v891 = vsel %vm360, %v889, %v890
    %v893 = vadd.f32 %v862, %v891
    %s894 = sld [smem:[#allocation7 + $0x50]]
    %v895 = vstv %s894
    %v896 = vmul.f32 %v895, %v873
    %898 = vrot.lane.b32.xlu0 %v896, 94
    %v899 = vpop.permute.xlu0 %898
    %v900 = vrot.slane %v899, 1
    %v901 = vsel %vm360, %v899, %v900
    %v903 = vadd.f32 %v872, %v901
    %v904 = vlaneseq
    %vm905 = vcmp.ge.s32.totalorder %v904, 0
    %vm906 = vcmp.lt.s32.totalorder %v904, 256
    %vm907 = vmand %vm905, %vm906
    %908 = vst.msk [vmem:[#allocation10] ss:$8 sm:$0x3] %vm907, %v883
    %909 = vst.msk [vmem:[#allocation10] ss:$8 sm:$0x0] %vm907, %v883
    %s910 = scalar_lea.vmem [#allocation10], 1
    %911 = vst.msk [vmem:[%s910] ss:$8 sm:$0x3] %vm907, %v893
    %912 = vst.msk [vmem:[%s910] ss:$8 sm:$0x0] %vm907, %v893
    %s913 = scalar_lea.vmem [#allocation10], 2
    %914 = vst.msk [vmem:[%s913] ss:$8 sm:$0x3] %vm907, %v903
    %915 = vst.msk [vmem:[%s913] ss:$8 sm:$0x0] %vm907, %v903
    %s916 = sld [smem:[#allocation8]]
    %v917 = vstv %s916
    %s918 = sld [smem:[#allocation8 + $0x1]]
    %v919 = vstv %s918
    %s920 = sld [smem:[#allocation8 + $0x2]]
    %v921 = vstv %s920
    %s922 = scalar_lea.vmem [#allocation2], 3
    %v923 = vld [vmem:[%s922] ss:$8 sm:$0x7]
    %v924 = vmul.f32 %v923, %v76
    %s925 = sld [smem:[#allocation7]]
    %v926 = vstv %s925
    %v927 = vmul.f32 %v926, %v924
    %v928 = vadd.f32 %v917, %v927
    %s929 = sld [smem:[#allocation7 + $0x1b]]
    %v930 = vstv %s929
    %v931 = vmul.f32 %v930, %v924
    %v932 = vadd.f32 %v919, %v931
    %s933 = sld [smem:[#allocation7 + $0x36]]
    %v934 = vstv %s933
    %v935 = vmul.f32 %v934, %v924
    %v936 = vadd.f32 %v921, %v935
    %s937 = sld [smem:[#allocation7 + $0x1]]
    %v938 = vstv %s937
    %v939 = vmul.f32 %v938, %v923
    %941 = vrot.lane.b32.xlu0 %v939, 127
    %v942 = vpop.permute.xlu0 %941
    %v943 = vrot.slane %v942, 1
    %v944 = vsel %vm106, %v942, %v943
    %v946 = vadd.f32 %v928, %v944
    %s947 = sld [smem:[#allocation7 + $0x1c]]
    %v948 = vstv %s947
    %v949 = vmul.f32 %v948, %v923
    %951 = vrot.lane.b32.xlu0 %v949, 127
    %v952 = vpop.permute.xlu0 %951
    %v953 = vrot.slane %v952, 1
    %v954 = vsel %vm106, %v952, %v953
    %v956 = vadd.f32 %v932, %v954
    %s957 = sld [smem:[#allocation7 + $0x37]]
    %v958 = vstv %s957
    %v959 = vmul.f32 %v958, %v923
    %961 = vrot.lane.b32.xlu0 %v959, 127
    %v962 = vpop.permute.xlu0 %961
    %v963 = vrot.slane %v962, 1
    %v964 = vsel %vm106, %v962, %v963
    %v966 = vadd.f32 %v936, %v964
    %v967 = vmul.f32 %v923, %v135
    %s968 = sld [smem:[#allocation7 + $0x2]]
    %v969 = vstv %s968
    %v970 = vmul.f32 %v969, %v967
    %972 = vrot.lane.b32.xlu0 %v970, 126
    %v973 = vpop.permute.xlu0 %972
    %v974 = vrot.slane %v973, 1
    %v975 = vsel %vm145, %v973, %v974
    %v977 = vadd.f32 %v946, %v975
    %s978 = sld [smem:[#allocation7 + $0x1d]]
    %v979 = vstv %s978
    %v980 = vmul.f32 %v979, %v967
    %982 = vrot.lane.b32.xlu0 %v980, 126
    %v983 = vpop.permute.xlu0 %982
    %v984 = vrot.slane %v983, 1
    %v985 = vsel %vm145, %v983, %v984
    %v987 = vadd.f32 %v956, %v985
    %s988 = sld [smem:[#allocation7 + $0x38]]
    %v989 = vstv %s988
    %v990 = vmul.f32 %v989, %v967
    %992 = vrot.lane.b32.xlu0 %v990, 126
    %v993 = vpop.permute.xlu0 %992
    %v994 = vrot.slane %v993, 1
    %v995 = vsel %vm145, %v993, %v994
    %v997 = vadd.f32 %v966, %v995
    %v998 = vmul.f32 %v923, %v174
    %s999 = sld [smem:[#allocation7 + $0x3]]
    %v1000 = vstv %s999
    %v1001 = vmul.f32 %v1000, %v998
    %1003 = vrot.lane.b32.xlu0 %v1001, 112
    %v1004 = vpop.permute.xlu0 %1003
    %v1005 = vrot.slane %v1004, 1
    %v1006 = vsel %vm184, %v1004, %v1005
    %v1008 = vadd.f32 %v977, %v1006
    %s1009 = sld [smem:[#allocation7 + $0x1e]]
    %v1010 = vstv %s1009
    %v1011 = vmul.f32 %v1010, %v998
    %1013 = vrot.lane.b32.xlu0 %v1011, 112
    %v1014 = vpop.permute.xlu0 %1013
    %v1015 = vrot.slane %v1014, 1
    %v1016 = vsel %vm184, %v1014, %v1015
    %v1018 = vadd.f32 %v987, %v1016
    %s1019 = sld [smem:[#allocation7 + $0x39]]
    %v1020 = vstv %s1019
    %v1021 = vmul.f32 %v1020, %v998
    %1023 = vrot.lane.b32.xlu0 %v1021, 112
    %v1024 = vpop.permute.xlu0 %1023
    %v1025 = vrot.slane %v1024, 1
    %v1026 = vsel %vm184, %v1024, %v1025
    %v1028 = vadd.f32 %v997, %v1026
    %s1029 = sld [smem:[#allocation7 + $0x4]]
    %v1030 = vstv %s1029
    %v1031 = vmul.f32 %v1030, %v923
    %1033 = vrot.lane.b32.xlu0 %v1031, 111
    %v1034 = vpop.permute.xlu0 %1033
    %v1035 = vrot.slane %v1034, 1
    %v1036 = vsel %vm215, %v1034, %v1035
    %v1038 = vadd.f32 %v1008, %v1036
    %s1039 = sld [smem:[#allocation7 + $0x1f]]
    %v1040 = vstv %s1039
    %v1041 = vmul.f32 %v1040, %v923
    %1043 = vrot.lane.b32.xlu0 %v1041, 111
    %v1044 = vpop.permute.xlu0 %1043
    %v1045 = vrot.slane %v1044, 1
    %v1046 = vsel %vm215, %v1044, %v1045
    %v1048 = vadd.f32 %v1018, %v1046
    %s1049 = sld [smem:[#allocation7 + $0x3a]]
    %v1050 = vstv %s1049
    %v1051 = vmul.f32 %v1050, %v923
    %1053 = vrot.lane.b32.xlu0 %v1051, 111
    %v1054 = vpop.permute.xlu0 %1053
    %v1055 = vrot.slane %v1054, 1
    %v1056 = vsel %vm215, %v1054, %v1055
    %v1058 = vadd.f32 %v1028, %v1056
    %v1059 = vmul.f32 %v923, %v243
    %s1060 = sld [smem:[#allocation7 + $0x5]]
    %v1061 = vstv %s1060
    %v1062 = vmul.f32 %v1061, %v1059
    %1064 = vrot.lane.b32.xlu0 %v1062, 110
    %v1065 = vpop.permute.xlu0 %1064
    %v1066 = vrot.slane %v1065, 1
    %v1067 = vsel %vm253, %v1065, %v1066
    %v1069 = vadd.f32 %v1038, %v1067
    %s1070 = sld [smem:[#allocation7 + $0x20]]
    %v1071 = vstv %s1070
    %v1072 = vmul.f32 %v1071, %v1059
    %1074 = vrot.lane.b32.xlu0 %v1072, 110
    %v1075 = vpop.permute.xlu0 %1074
    %v1076 = vrot.slane %v1075, 1
    %v1077 = vsel %vm253, %v1075, %v1076
    %v1079 = vadd.f32 %v1048, %v1077
    %s1080 = sld [smem:[#allocation7 + $0x3b]]
    %v1081 = vstv %s1080
    %v1082 = vmul.f32 %v1081, %v1059
    %1084 = vrot.lane.b32.xlu0 %v1082, 110
    %v1085 = vpop.permute.xlu0 %1084
    %v1086 = vrot.slane %v1085, 1
    %v1087 = vsel %vm253, %v1085, %v1086
    %v1089 = vadd.f32 %v1058, %v1087
    %v1090 = vmul.f32 %v923, %v281
    %s1091 = sld [smem:[#allocation7 + $0x6]]
    %v1092 = vstv %s1091
    %v1093 = vmul.f32 %v1092, %v1090
    %1095 = vrot.lane.b32.xlu0 %v1093, 96
    %v1096 = vpop.permute.xlu0 %1095
    %v1097 = vrot.slane %v1096, 1
    %v1098 = vsel %vm291, %v1096, %v1097
    %v1100 = vadd.f32 %v1069, %v1098
    %s1101 = sld [smem:[#allocation7 + $0x21]]
    %v1102 = vstv %s1101
    %v1103 = vmul.f32 %v1102, %v1090
    %1105 = vrot.lane.b32.xlu0 %v1103, 96
    %v1106 = vpop.permute.xlu0 %1105
    %v1107 = vrot.slane %v1106, 1
    %v1108 = vsel %vm291, %v1106, %v1107
    %v1110 = vadd.f32 %v1079, %v1108
    %s1111 = sld [smem:[#allocation7 + $0x3c]]
    %v1112 = vstv %s1111
    %v1113 = vmul.f32 %v1112, %v1090
    %1115 = vrot.lane.b32.xlu0 %v1113, 96
    %v1116 = vpop.permute.xlu0 %1115
    %v1117 = vrot.slane %v1116, 1
    %v1118 = vsel %vm291, %v1116, %v1117
    %v1120 = vadd.f32 %v1089, %v1118
    %s1121 = sld [smem:[#allocation7 + $0x7]]
    %v1122 = vstv %s1121
    %v1123 = vmul.f32 %v1122, %v923
    %1125 = vrot.lane.b32.xlu0 %v1123, 95
    %v1126 = vpop.permute.xlu0 %1125
    %v1127 = vrot.slane %v1126, 1
    %v1128 = vsel %vm322, %v1126, %v1127
    %v1130 = vadd.f32 %v1100, %v1128
    %s1131 = sld [smem:[#allocation7 + $0x22]]
    %v1132 = vstv %s1131
    %v1133 = vmul.f32 %v1132, %v923
    %1135 = vrot.lane.b32.xlu0 %v1133, 95
    %v1136 = vpop.permute.xlu0 %1135
    %v1137 = vrot.slane %v1136, 1
    %v1138 = vsel %vm322, %v1136, %v1137
    %v1140 = vadd.f32 %v1110, %v1138
    %s1141 = sld [smem:[#allocation7 + $0x3d]]
    %v1142 = vstv %s1141
    %v1143 = vmul.f32 %v1142, %v923
    %1145 = vrot.lane.b32.xlu0 %v1143, 95
    %v1146 = vpop.permute.xlu0 %1145
    %v1147 = vrot.slane %v1146, 1
    %v1148 = vsel %vm322, %v1146, %v1147
    %v1150 = vadd.f32 %v1120, %v1148
    %v1151 = vmul.f32 %v923, %v350
    %s1152 = sld [smem:[#allocation7 + $0x8]]
    %v1153 = vstv %s1152
    %v1154 = vmul.f32 %v1153, %v1151
    %1156 = vrot.lane.b32.xlu0 %v1154, 94
    %v1157 = vpop.permute.xlu0 %1156
    %v1158 = vrot.slane %v1157, 1
    %v1159 = vsel %vm360, %v1157, %v1158
    %v1161 = vadd.f32 %v1130, %v1159
    %s1162 = sld [smem:[#allocation7 + $0x23]]
    %v1163 = vstv %s1162
    %v1164 = vmul.f32 %v1163, %v1151
    %1166 = vrot.lane.b32.xlu0 %v1164, 94
    %v1167 = vpop.permute.xlu0 %1166
    %v1168 = vrot.slane %v1167, 1
    %v1169 = vsel %vm360, %v1167, %v1168
    %v1171 = vadd.f32 %v1140, %v1169
    %s1172 = sld [smem:[#allocation7 + $0x3e]]
    %v1173 = vstv %s1172
    %v1174 = vmul.f32 %v1173, %v1151
    %1176 = vrot.lane.b32.xlu0 %v1174, 94
    %v1177 = vpop.permute.xlu0 %1176
    %v1178 = vrot.slane %v1177, 1
    %v1179 = vsel %vm360, %v1177, %v1178
    %v1181 = vadd.f32 %v1150, %v1179
    %s1182 = scalar_lea.vmem [#allocation2], 4
    %v1183 = vld [vmem:[%s1182] ss:$8 sm:$0x7]
    %v1184 = vmul.f32 %v1183, %v76
    %s1185 = sld [smem:[#allocation7 + $0x9]]
    %v1186 = vstv %s1185
    %v1187 = vmul.f32 %v1186, %v1184
    %v1188 = vadd.f32 %v1161, %v1187
    %s1189 = sld [smem:[#allocation7 + $0x24]]
    %v1190 = vstv %s1189
    %v1191 = vmul.f32 %v1190, %v1184
    %v1192 = vadd.f32 %v1171, %v1191
    %s1193 = sld [smem:[#allocation7 + $0x3f]]
    %v1194 = vstv %s1193
    %v1195 = vmul.f32 %v1194, %v1184
    %v1196 = vadd.f32 %v1181, %v1195
    %s1197 = sld [smem:[#allocation7 + $0xa]]
    %v1198 = vstv %s1197
    %v1199 = vmul.f32 %v1198, %v1183
    %1201 = vrot.lane.b32.xlu0 %v1199, 127
    %v1202 = vpop.permute.xlu0 %1201
    %v1203 = vrot.slane %v1202, 1
    %v1204 = vsel %vm106, %v1202, %v1203
    %v1206 = vadd.f32 %v1188, %v1204
    %s1207 = sld [smem:[#allocation7 + $0x25]]
    %v1208 = vstv %s1207
    %v1209 = vmul.f32 %v1208, %v1183
    %1211 = vrot.lane.b32.xlu0 %v1209, 127
    %v1212 = vpop.permute.xlu0 %1211
    %v1213 = vrot.slane %v1212, 1
    %v1214 = vsel %vm106, %v1212, %v1213
    %v1216 = vadd.f32 %v1192, %v1214
    %s1217 = sld [smem:[#allocation7 + $0x40]]
    %v1218 = vstv %s1217
    %v1219 = vmul.f32 %v1218, %v1183
    %1221 = vrot.lane.b32.xlu0 %v1219, 127
    %v1222 = vpop.permute.xlu0 %1221
    %v1223 = vrot.slane %v1222, 1
    %v1224 = vsel %vm106, %v1222, %v1223
    %v1226 = vadd.f32 %v1196, %v1224
    %v1227 = vmul.f32 %v1183, %v135
    %s1228 = sld [smem:[#allocation7 + $0xb]]
    %v1229 = vstv %s1228
    %v1230 = vmul.f32 %v1229, %v1227
    %1232 = vrot.lane.b32.xlu0 %v1230, 126
    %v1233 = vpop.permute.xlu0 %1232
    %v1234 = vrot.slane %v1233, 1
    %v1235 = vsel %vm145, %v1233, %v1234
    %v1237 = vadd.f32 %v1206, %v1235
    %s1238 = sld [smem:[#allocation7 + $0x26]]
    %v1239 = vstv %s1238
    %v1240 = vmul.f32 %v1239, %v1227
    %1242 = vrot.lane.b32.xlu0 %v1240, 126
    %v1243 = vpop.permute.xlu0 %1242
    %v1244 = vrot.slane %v1243, 1
    %v1245 = vsel %vm145, %v1243, %v1244
    %v1247 = vadd.f32 %v1216, %v1245
    %s1248 = sld [smem:[#allocation7 + $0x41]]
    %v1249 = vstv %s1248
    %v1250 = vmul.f32 %v1249, %v1227
    %1252 = vrot.lane.b32.xlu0 %v1250, 126
    %v1253 = vpop.permute.xlu0 %1252
    %v1254 = vrot.slane %v1253, 1
    %v1255 = vsel %vm145, %v1253, %v1254
    %v1257 = vadd.f32 %v1226, %v1255
    %v1258 = vmul.f32 %v1183, %v174
    %s1259 = sld [smem:[#allocation7 + $0xc]]
    %v1260 = vstv %s1259
    %v1261 = vmul.f32 %v1260, %v1258
    %1263 = vrot.lane.b32.xlu0 %v1261, 112
    %v1264 = vpop.permute.xlu0 %1263
    %v1265 = vrot.slane %v1264, 1
    %v1266 = vsel %vm184, %v1264, %v1265
    %v1268 = vadd.f32 %v1237, %v1266
    %s1269 = sld [smem:[#allocation7 + $0x27]]
    %v1270 = vstv %s1269
    %v1271 = vmul.f32 %v1270, %v1258
    %1273 = vrot.lane.b32.xlu0 %v1271, 112
    %v1274 = vpop.permute.xlu0 %1273
    %v1275 = vrot.slane %v1274, 1
    %v1276 = vsel %vm184, %v1274, %v1275
    %v1278 = vadd.f32 %v1247, %v1276
    %s1279 = sld [smem:[#allocation7 + $0x42]]
    %v1280 = vstv %s1279
    %v1281 = vmul.f32 %v1280, %v1258
    %1283 = vrot.lane.b32.xlu0 %v1281, 112
    %v1284 = vpop.permute.xlu0 %1283
    %v1285 = vrot.slane %v1284, 1
    %v1286 = vsel %vm184, %v1284, %v1285
    %v1288 = vadd.f32 %v1257, %v1286
    %s1289 = sld [smem:[#allocation7 + $0xd]]
    %v1290 = vstv %s1289
    %v1291 = vmul.f32 %v1290, %v1183
    %1293 = vrot.lane.b32.xlu0 %v1291, 111
    %v1294 = vpop.permute.xlu0 %1293
    %v1295 = vrot.slane %v1294, 1
    %v1296 = vsel %vm215, %v1294, %v1295
    %v1298 = vadd.f32 %v1268, %v1296
    %s1299 = sld [smem:[#allocation7 + $0x28]]
    %v1300 = vstv %s1299
    %v1301 = vmul.f32 %v1300, %v1183
    %1303 = vrot.lane.b32.xlu0 %v1301, 111
    %v1304 = vpop.permute.xlu0 %1303
    %v1305 = vrot.slane %v1304, 1
    %v1306 = vsel %vm215, %v1304, %v1305
    %v1308 = vadd.f32 %v1278, %v1306
    %s1309 = sld [smem:[#allocation7 + $0x43]]
    %v1310 = vstv %s1309
    %v1311 = vmul.f32 %v1310, %v1183
    %1313 = vrot.lane.b32.xlu0 %v1311, 111
    %v1314 = vpop.permute.xlu0 %1313
    %v1315 = vrot.slane %v1314, 1
    %v1316 = vsel %vm215, %v1314, %v1315
    %v1318 = vadd.f32 %v1288, %v1316
    %v1319 = vmul.f32 %v1183, %v243
    %s1320 = sld [smem:[#allocation7 + $0xe]]
    %v1321 = vstv %s1320
    %v1322 = vmul.f32 %v1321, %v1319
    %1324 = vrot.lane.b32.xlu0 %v1322, 110
    %v1325 = vpop.permute.xlu0 %1324
    %v1326 = vrot.slane %v1325, 1
    %v1327 = vsel %vm253, %v1325, %v1326
    %v1329 = vadd.f32 %v1298, %v1327
    %s1330 = sld [smem:[#allocation7 + $0x29]]
    %v1331 = vstv %s1330
    %v1332 = vmul.f32 %v1331, %v1319
    %1334 = vrot.lane.b32.xlu0 %v1332, 110
    %v1335 = vpop.permute.xlu0 %1334
    %v1336 = vrot.slane %v1335, 1
    %v1337 = vsel %vm253, %v1335, %v1336
    %v1339 = vadd.f32 %v1308, %v1337
    %s1340 = sld [smem:[#allocation7 + $0x44]]
    %v1341 = vstv %s1340
    %v1342 = vmul.f32 %v1341, %v1319
    %1344 = vrot.lane.b32.xlu0 %v1342, 110
    %v1345 = vpop.permute.xlu0 %1344
    %v1346 = vrot.slane %v1345, 1
    %v1347 = vsel %vm253, %v1345, %v1346
    %v1349 = vadd.f32 %v1318, %v1347
    %v1350 = vmul.f32 %v1183, %v281
    %s1351 = sld [smem:[#allocation7 + $0xf]]
    %v1352 = vstv %s1351
    %v1353 = vmul.f32 %v1352, %v1350
    %1355 = vrot.lane.b32.xlu0 %v1353, 96
    %v1356 = vpop.permute.xlu0 %1355
    %v1357 = vrot.slane %v1356, 1
    %v1358 = vsel %vm291, %v1356, %v1357
    %v1360 = vadd.f32 %v1329, %v1358
    %s1361 = sld [smem:[#allocation7 + $0x2a]]
    %v1362 = vstv %s1361
    %v1363 = vmul.f32 %v1362, %v1350
    %1365 = vrot.lane.b32.xlu0 %v1363, 96
    %v1366 = vpop.permute.xlu0 %1365
    %v1367 = vrot.slane %v1366, 1
    %v1368 = vsel %vm291, %v1366, %v1367
    %v1370 = vadd.f32 %v1339, %v1368
    %s1371 = sld [smem:[#allocation7 + $0x45]]
    %v1372 = vstv %s1371
    %v1373 = vmul.f32 %v1372, %v1350
    %1375 = vrot.lane.b32.xlu0 %v1373, 96
    %v1376 = vpop.permute.xlu0 %1375
    %v1377 = vrot.slane %v1376, 1
    %v1378 = vsel %vm291, %v1376, %v1377
    %v1380 = vadd.f32 %v1349, %v1378
    %s1381 = sld [smem:[#allocation7 + $0x10]]
    %v1382 = vstv %s1381
    %v1383 = vmul.f32 %v1382, %v1183
    %1385 = vrot.lane.b32.xlu0 %v1383, 95
    %v1386 = vpop.permute.xlu0 %1385
    %v1387 = vrot.slane %v1386, 1
    %v1388 = vsel %vm322, %v1386, %v1387
    %v1390 = vadd.f32 %v1360, %v1388
    %s1391 = sld [smem:[#allocation7 + $0x2b]]
    %v1392 = vstv %s1391
    %v1393 = vmul.f32 %v1392, %v1183
    %1395 = vrot.lane.b32.xlu0 %v1393, 95
    %v1396 = vpop.permute.xlu0 %1395
    %v1397 = vrot.slane %v1396, 1
    %v1398 = vsel %vm322, %v1396, %v1397
    %v1400 = vadd.f32 %v1370, %v1398
    %s1401 = sld [smem:[#allocation7 + $0x46]]
    %v1402 = vstv %s1401
    %v1403 = vmul.f32 %v1402, %v1183
    %1405 = vrot.lane.b32.xlu0 %v1403, 95
    %v1406 = vpop.permute.xlu0 %1405
    %v1407 = vrot.slane %v1406, 1
    %v1408 = vsel %vm322, %v1406, %v1407
    %v1410 = vadd.f32 %v1380, %v1408
    %v1411 = vmul.f32 %v1183, %v350
    %s1412 = sld [smem:[#allocation7 + $0x11]]
    %v1413 = vstv %s1412
    %v1414 = vmul.f32 %v1413, %v1411
    %1416 = vrot.lane.b32.xlu0 %v1414, 94
    %v1417 = vpop.permute.xlu0 %1416
    %v1418 = vrot.slane %v1417, 1
    %v1419 = vsel %vm360, %v1417, %v1418
    %v1421 = vadd.f32 %v1390, %v1419
    %s1422 = sld [smem:[#allocation7 + $0x2c]]
    %v1423 = vstv %s1422
    %v1424 = vmul.f32 %v1423, %v1411
    %1426 = vrot.lane.b32.xlu0 %v1424, 94
    %v1427 = vpop.permute.xlu0 %1426
    %v1428 = vrot.slane %v1427, 1
    %v1429 = vsel %vm360, %v1427, %v1428
    %v1431 = vadd.f32 %v1400, %v1429
    %s1432 = sld [smem:[#allocation7 + $0x47]]
    %v1433 = vstv %s1432
    %v1434 = vmul.f32 %v1433, %v1411
    %1436 = vrot.lane.b32.xlu0 %v1434, 94
    %v1437 = vpop.permute.xlu0 %1436
    %v1438 = vrot.slane %v1437, 1
    %v1439 = vsel %vm360, %v1437, %v1438
    %v1441 = vadd.f32 %v1410, %v1439
    %s1442 = scalar_lea.vmem [#allocation2], 5
    %v1443 = vld [vmem:[%s1442] ss:$8 sm:$0x7]
    %v1444 = vmul.f32 %v1443, %v76
    %s1445 = sld [smem:[#allocation7 + $0x12]]
    %v1446 = vstv %s1445
    %v1447 = vmul.f32 %v1446, %v1444
    %v1448 = vadd.f32 %v1421, %v1447
    %s1449 = sld [smem:[#allocation7 + $0x2d]]
    %v1450 = vstv %s1449
    %v1451 = vmul.f32 %v1450, %v1444
    %v1452 = vadd.f32 %v1431, %v1451
    %s1453 = sld [smem:[#allocation7 + $0x48]]
    %v1454 = vstv %s1453
    %v1455 = vmul.f32 %v1454, %v1444
    %v1456 = vadd.f32 %v1441, %v1455
    %s1457 = sld [smem:[#allocation7 + $0x13]]
    %v1458 = vstv %s1457
    %v1459 = vmul.f32 %v1458, %v1443
    %1461 = vrot.lane.b32.xlu0 %v1459, 127
    %v1462 = vpop.permute.xlu0 %1461
    %v1463 = vrot.slane %v1462, 1
    %v1464 = vsel %vm106, %v1462, %v1463
    %v1466 = vadd.f32 %v1448, %v1464
    %s1467 = sld [smem:[#allocation7 + $0x2e]]
    %v1468 = vstv %s1467
    %v1469 = vmul.f32 %v1468, %v1443
    %1471 = vrot.lane.b32.xlu0 %v1469, 127
    %v1472 = vpop.permute.xlu0 %1471
    %v1473 = vrot.slane %v1472, 1
    %v1474 = vsel %vm106, %v1472, %v1473
    %v1476 = vadd.f32 %v1452, %v1474
    %s1477 = sld [smem:[#allocation7 + $0x49]]
    %v1478 = vstv %s1477
    %v1479 = vmul.f32 %v1478, %v1443
    %1481 = vrot.lane.b32.xlu0 %v1479, 127
    %v1482 = vpop.permute.xlu0 %1481
    %v1483 = vrot.slane %v1482, 1
    %v1484 = vsel %vm106, %v1482, %v1483
    %v1486 = vadd.f32 %v1456, %v1484
    %v1487 = vmul.f32 %v1443, %v135
    %s1488 = sld [smem:[#allocation7 + $0x14]]
    %v1489 = vstv %s1488
    %v1490 = vmul.f32 %v1489, %v1487
    %1492 = vrot.lane.b32.xlu0 %v1490, 126
    %v1493 = vpop.permute.xlu0 %1492
    %v1494 = vrot.slane %v1493, 1
    %v1495 = vsel %vm145, %v1493, %v1494
    %v1497 = vadd.f32 %v1466, %v1495
    %s1498 = sld [smem:[#allocation7 + $0x2f]]
    %v1499 = vstv %s1498
    %v1500 = vmul.f32 %v1499, %v1487
    %1502 = vrot.lane.b32.xlu0 %v1500, 126
    %v1503 = vpop.permute.xlu0 %1502
    %v1504 = vrot.slane %v1503, 1
    %v1505 = vsel %vm145, %v1503, %v1504
    %v1507 = vadd.f32 %v1476, %v1505
    %s1508 = sld [smem:[#allocation7 + $0x4a]]
    %v1509 = vstv %s1508
    %v1510 = vmul.f32 %v1509, %v1487
    %1512 = vrot.lane.b32.xlu0 %v1510, 126
    %v1513 = vpop.permute.xlu0 %1512
    %v1514 = vrot.slane %v1513, 1
    %v1515 = vsel %vm145, %v1513, %v1514
    %v1517 = vadd.f32 %v1486, %v1515
    %v1518 = vmul.f32 %v1443, %v174
    %s1519 = sld [smem:[#allocation7 + $0x15]]
    %v1520 = vstv %s1519
    %v1521 = vmul.f32 %v1520, %v1518
    %1523 = vrot.lane.b32.xlu0 %v1521, 112
    %v1524 = vpop.permute.xlu0 %1523
    %v1525 = vrot.slane %v1524, 1
    %v1526 = vsel %vm184, %v1524, %v1525
    %v1528 = vadd.f32 %v1497, %v1526
    %s1529 = sld [smem:[#allocation7 + $0x30]]
    %v1530 = vstv %s1529
    %v1531 = vmul.f32 %v1530, %v1518
    %1533 = vrot.lane.b32.xlu0 %v1531, 112
    %v1534 = vpop.permute.xlu0 %1533
    %v1535 = vrot.slane %v1534, 1
    %v1536 = vsel %vm184, %v1534, %v1535
    %v1538 = vadd.f32 %v1507, %v1536
    %s1539 = sld [smem:[#allocation7 + $0x4b]]
    %v1540 = vstv %s1539
    %v1541 = vmul.f32 %v1540, %v1518
    %1543 = vrot.lane.b32.xlu0 %v1541, 112
    %v1544 = vpop.permute.xlu0 %1543
    %v1545 = vrot.slane %v1544, 1
    %v1546 = vsel %vm184, %v1544, %v1545
    %v1548 = vadd.f32 %v1517, %v1546
    %s1549 = sld [smem:[#allocation7 + $0x16]]
    %v1550 = vstv %s1549
    %v1551 = vmul.f32 %v1550, %v1443
    %1553 = vrot.lane.b32.xlu0 %v1551, 111
    %v1554 = vpop.permute.xlu0 %1553
    %v1555 = vrot.slane %v1554, 1
    %v1556 = vsel %vm215, %v1554, %v1555
    %v1558 = vadd.f32 %v1528, %v1556
    %s1559 = sld [smem:[#allocation7 + $0x31]]
    %v1560 = vstv %s1559
    %v1561 = vmul.f32 %v1560, %v1443
    %1563 = vrot.lane.b32.xlu0 %v1561, 111
    %v1564 = vpop.permute.xlu0 %1563
    %v1565 = vrot.slane %v1564, 1
    %v1566 = vsel %vm215, %v1564, %v1565
    %v1568 = vadd.f32 %v1538, %v1566
    %s1569 = sld [smem:[#allocation7 + $0x4c]]
    %v1570 = vstv %s1569
    %v1571 = vmul.f32 %v1570, %v1443
    %1573 = vrot.lane.b32.xlu0 %v1571, 111
    %v1574 = vpop.permute.xlu0 %1573
    %v1575 = vrot.slane %v1574, 1
    %v1576 = vsel %vm215, %v1574, %v1575
    %v1578 = vadd.f32 %v1548, %v1576
    %v1579 = vmul.f32 %v1443, %v243
    %s1580 = sld [smem:[#allocation7 + $0x17]]
    %v1581 = vstv %s1580
    %v1582 = vmul.f32 %v1581, %v1579
    %1584 = vrot.lane.b32.xlu0 %v1582, 110
    %v1585 = vpop.permute.xlu0 %1584
    %v1586 = vrot.slane %v1585, 1
    %v1587 = vsel %vm253, %v1585, %v1586
    %v1589 = vadd.f32 %v1558, %v1587
    %s1590 = sld [smem:[#allocation7 + $0x32]]
    %v1591 = vstv %s1590
    %v1592 = vmul.f32 %v1591, %v1579
    %1594 = vrot.lane.b32.xlu0 %v1592, 110
    %v1595 = vpop.permute.xlu0 %1594
    %v1596 = vrot.slane %v1595, 1
    %v1597 = vsel %vm253, %v1595, %v1596
    %v1599 = vadd.f32 %v1568, %v1597
    %s1600 = sld [smem:[#allocation7 + $0x4d]]
    %v1601 = vstv %s1600
    %v1602 = vmul.f32 %v1601, %v1579
    %1604 = vrot.lane.b32.xlu0 %v1602, 110
    %v1605 = vpop.permute.xlu0 %1604
    %v1606 = vrot.slane %v1605, 1
    %v1607 = vsel %vm253, %v1605, %v1606
    %v1609 = vadd.f32 %v1578, %v1607
    %v1610 = vmul.f32 %v1443, %v281
    %s1611 = sld [smem:[#allocation7 + $0x18]]
    %v1612 = vstv %s1611
    %v1613 = vmul.f32 %v1612, %v1610
    %1615 = vrot.lane.b32.xlu0 %v1613, 96
    %v1616 = vpop.permute.xlu0 %1615
    %v1617 = vrot.slane %v1616, 1
    %v1618 = vsel %vm291, %v1616, %v1617
    %v1620 = vadd.f32 %v1589, %v1618
    %s1621 = sld [smem:[#allocation7 + $0x33]]
    %v1622 = vstv %s1621
    %v1623 = vmul.f32 %v1622, %v1610
    %1625 = vrot.lane.b32.xlu0 %v1623, 96
    %v1626 = vpop.permute.xlu0 %1625
    %v1627 = vrot.slane %v1626, 1
    %v1628 = vsel %vm291, %v1626, %v1627
    %v1630 = vadd.f32 %v1599, %v1628
    %s1631 = sld [smem:[#allocation7 + $0x4e]]
    %v1632 = vstv %s1631
    %v1633 = vmul.f32 %v1632, %v1610
    %1635 = vrot.lane.b32.xlu0 %v1633, 96
    %v1636 = vpop.permute.xlu0 %1635
    %v1637 = vrot.slane %v1636, 1
    %v1638 = vsel %vm291, %v1636, %v1637
    %v1640 = vadd.f32 %v1609, %v1638
    %s1641 = sld [smem:[#allocation7 + $0x19]]
    %v1642 = vstv %s1641
    %v1643 = vmul.f32 %v1642, %v1443
    %1645 = vrot.lane.b32.xlu0 %v1643, 95
    %v1646 = vpop.permute.xlu0 %1645
    %v1647 = vrot.slane %v1646, 1
    %v1648 = vsel %vm322, %v1646, %v1647
    %v1650 = vadd.f32 %v1620, %v1648
    %s1651 = sld [smem:[#allocation7 + $0x34]]
    %v1652 = vstv %s1651
    %v1653 = vmul.f32 %v1652, %v1443
    %1655 = vrot.lane.b32.xlu0 %v1653, 95
    %v1656 = vpop.permute.xlu0 %1655
    %v1657 = vrot.slane %v1656, 1
    %v1658 = vsel %vm322, %v1656, %v1657
    %v1660 = vadd.f32 %v1630, %v1658
    %s1661 = sld [smem:[#allocation7 + $0x4f]]
    %v1662 = vstv %s1661
    %v1663 = vmul.f32 %v1662, %v1443
    %1665 = vrot.lane.b32.xlu0 %v1663, 95
    %v1666 = vpop.permute.xlu0 %1665
    %v1667 = vrot.slane %v1666, 1
    %v1668 = vsel %vm322, %v1666, %v1667
    %v1670 = vadd.f32 %v1640, %v1668
    %v1671 = vmul.f32 %v1443, %v350
    %s1672 = sld [smem:[#allocation7 + $0x1a]]
    %v1673 = vstv %s1672
    %v1674 = vmul.f32 %v1673, %v1671
    %1676 = vrot.lane.b32.xlu0 %v1674, 94
    %v1677 = vpop.permute.xlu0 %1676
    %v1678 = vrot.slane %v1677, 1
    %v1679 = vsel %vm360, %v1677, %v1678
    %v1681 = vadd.f32 %v1650, %v1679
    %s1682 = sld [smem:[#allocation7 + $0x35]]
    %v1683 = vstv %s1682
    %v1684 = vmul.f32 %v1683, %v1671
    %1686 = vrot.lane.b32.xlu0 %v1684, 94
    %v1687 = vpop.permute.xlu0 %1686
    %v1688 = vrot.slane %v1687, 1
    %v1689 = vsel %vm360, %v1687, %v1688
    %v1691 = vadd.f32 %v1660, %v1689
    %s1692 = sld [smem:[#allocation7 + $0x50]]
    %v1693 = vstv %s1692
    %v1694 = vmul.f32 %v1693, %v1671
    %1696 = vrot.lane.b32.xlu0 %v1694, 94
    %v1697 = vpop.permute.xlu0 %1696
    %v1698 = vrot.slane %v1697, 1
    %v1699 = vsel %vm360, %v1697, %v1698
    %v1701 = vadd.f32 %v1670, %v1699
    %s1702 = scalar_lea.vmem [#allocation10], 3
    %1703 = vst.msk [vmem:[%s1702] ss:$8 sm:$0x3] %vm907, %v1681
    %1704 = vst.msk [vmem:[%s1702] ss:$8 sm:$0x0] %vm907, %v1681
    %s1705 = scalar_lea.vmem [#allocation10], 4
    %1706 = vst.msk [vmem:[%s1705] ss:$8 sm:$0x3] %vm907, %v1691
    %1707 = vst.msk [vmem:[%s1705] ss:$8 sm:$0x0] %vm907, %v1691
    %s1708 = scalar_lea.vmem [#allocation10], 5
    %1709 = vst.msk [vmem:[%s1708] ss:$8 sm:$0x3] %vm907, %v1701
    %1710 = vst.msk [vmem:[%s1708] ss:$8 sm:$0x0] %vm907, %v1701
    // Predicated region
    $region30: #{tpu_custom_call.1} parent=1 // pred_check
      _
    $region31: #{tpu_custom_call.1} parent=1 // pred_check_branch
      %1712 = sbr.rel (0) target = $region33
    $region32: #{tpu_custom_call.1} parent=1 // pred_region
      %s1714 = ssub.s32 256, 256
      %1715 = vsyncadd [#allocation5], %s1714
      %s1717 = sshll.u32 [#allocation10], 4
      %s1718 = int_to_ptr.vmem [resolvable:$true] %s1717
      %1720 = dma.vmem_to_hbm [thread:$0]  %s1718, 256, %s4, [#allocation5]
    $region33: #{tpu_custom_call.1} parent=1 // pred_fallthru
      _
    // Predicated region
    $region34: #{tpu_custom_call.1} parent=1 // pred_check
      _
    $region35: #{tpu_custom_call.1} parent=1 // pred_check_branch
      %1722 = sbr.rel (0) target = $region37
    $region36: #{tpu_custom_call.1} parent=1 // pred_region
      %1723 = dma.done [#allocation5], 256
    $region37: #{tpu_custom_call.1} parent=1 // pred_fallthru
      _
    %1724 = vsyncpa [#allocation4], 1
    %1725 = vsyncpa [#allocation5], 1
    %1726 = vsyncpa [#allocation6], 1
    %1727 = vsyncpa [#allocation9], 1

</llo_original>
